<compile_context>
chip_gen: v7x
topology: tpu7x:2x2x1
jax: 0.10.0
libtpu: 0.0.40
codegen_flags: <defaults>
</compile_context>

<pallas_src>
import jax
import jax.numpy as jnp
import numpy as np
from jax.experimental import pallas as pl
from jax.experimental.pallas import tpu as pltpu

EPS = 1e-5


# ----------------------------------------------------------------------------
# Host-side (trace-time) weight folding into the lane-dense (H, W*C) layout.
# ----------------------------------------------------------------------------
def band3x3(w, W):
    """w: (3, 3, Cin, Cout) HWIO -> (3, W*Cin, W*Cout) block-banded matrices.

    For each vertical tap dy:  out_row = padded_in_row[dy] @ B[dy]
    implements the horizontal part of the 'same' 3x3 conv; horizontal zero
    padding is absorbed (out-of-range taps are simply dropped from the band).
    """
    _, _, Cin, Cout = w.shape
    # P[dx][x + dx - 1, x] = 1   (only where 0 <= x+dx-1 < W)
    P = jnp.stack([jnp.eye(W, W, k=1 - dx, dtype=w.dtype) for dx in range(3)])
    B = jnp.einsum("dij,edab->eiajb", P, w)            # (dy, W, Cin, W, Cout)
    return B.reshape(3, W * Cin, W * Cout)


def band1x1(w, W):
    """w: (Cin, Cout) -> (W*Cin, W*Cout) block-diagonal (per-pixel channel mix)."""
    return jnp.kron(jnp.eye(W, dtype=w.dtype), w)


def band1x1_stride2(w, W):
    """w: (Cin, Cout) -> (W*Cin, (W//2)*Cout): 1x1 conv with column stride 2."""
    Cin, Cout = w.shape
    P = jnp.eye(W, dtype=w.dtype)[:, ::2]              # (W, W//2), P[2j, j] = 1
    return jnp.einsum("ij,ab->iajb", P, w).reshape(W * Cin, (W // 2) * Cout)


def tile_row(v, W):
    """(C,) -> (1, W*C) broadcast row in the (H, W*C) layout."""
    return jnp.tile(v.astype(jnp.float32), W)[None, :]


# ----------------------------------------------------------------------------
# In-kernel helpers
# ----------------------------------------------------------------------------
def _pad_rows(p_ref, rows, H):
    """Write `rows` (H, W*C) into a (H+2, W*C) VMEM scratch with zero halo rows."""
    zero = jnp.zeros((1, p_ref.shape[1]), jnp.float32)
    p_ref[0:1, :] = zero
    p_ref[H + 1:H + 2, :] = zero
    p_ref[1:H + 1, :] = rows


def _conv3(p_ref, w_ref, H):
    """'same' 3x3 conv on the row-padded scratch: 3 banded matmuls (one per dy)."""
    acc = jnp.dot(p_ref[0:H, :], w_ref[0], preferred_element_type=jnp.float32)
    for dy in (1, 2):
        acc = acc + jnp.dot(p_ref[dy:dy + H, :], w_ref[dy],
                            preferred_element_type=jnp.float32)
    return acc


# ----------------------------------------------------------------------------
# Pallas kernels (one image per grid step, activations as (H, W*C))
# ----------------------------------------------------------------------------
def _front_kernel(x_ref, w1_ref, b1_ref, wb1_ref, bb1_ref, g_ref,
                  t_ref, stats_ref, xp_ref, x1p_ref):
    """x1 = ReLU(conv3x3(x)); t = conv3x3(x1); per-image channel sum / sum-of-squares."""
    H = t_ref.shape[0]

    # conv_relu1
    _pad_rows(xp_ref, x_ref[...], H)
    x1 = jnp.maximum(_conv3(xp_ref, w1_ref, H) + b1_ref[...], 0.0)

    # conv_block conv #1 (pre-BatchNorm)
    _pad_rows(x1p_ref, x1, H)
    t = _conv3(x1p_ref, wb1_ref, H) + bb1_ref[...]
    t_ref[...] = t

    # Per-image partial BN statistics: channel gather via matmul with g
    # (shape (W*Cout, Cout)) + a cheap sublane reduction.  Accumulated in f32.
    s1 = jnp.sum(jnp.dot(t, g_ref[...], preferred_element_type=jnp.float32),
                 axis=0, keepdims=True)
    s2 = jnp.sum(jnp.dot(t * t, g_ref[...], preferred_element_type=jnp.float32),
                 axis=0, keepdims=True)
    stats_ref[0:1, :] = s1
    stats_ref[1:2, :] = s2


def _back_kernel(t_ref, x_ref, bnsc_ref, bnsh_ref, wb2_ref, bb2_ref,
                 ws_ref, bs_ref, w2_ref, b2_ref, s_ref, d_ref, bd_ref,
                 out_ref, down_ref, p1_ref, p2_ref):
    """BN(+ReLU) -> conv3x3 -> (+shortcut 1x1) -> ReLU(conv3x3) -> down (1x1 stride 2)."""
    H = out_ref.shape[0]

    # BatchNorm (batch statistics folded into per-channel scale/shift rows) + ReLU
    tb = jnp.maximum(t_ref[...] * bnsc_ref[...] + bnsh_ref[...], 0.0)

    # conv_block conv #2
    _pad_rows(p1_ref, tb, H)
    x2 = _conv3(p1_ref, wb2_ref, H) + bb2_ref[...]

    # shortcut (1x1 conv on the block input) + residual add
    xs = jnp.dot(x_ref[...], ws_ref[...], preferred_element_type=jnp.float32) + bs_ref[...]
    x3 = xs + x2

    # conv_relu2
    _pad_rows(p2_ref, x3, H)
    out = jnp.maximum(_conv3(p2_ref, w2_ref, H) + b2_ref[...], 0.0)
    out_ref[...] = out

    # down: 1x1 conv, stride 2.  Row selection (S: H//2 x H) and column-strided
    # channel mix (D: W*C x (W//2)*C) are two small matmuls — no strided slicing.
    down_ref[...] = (jnp.dot(s_ref[...],
                             jnp.dot(out, d_ref[...], preferred_element_type=jnp.float32),
                             preferred_element_type=jnp.float32) + bd_ref[...])


# ----------------------------------------------------------------------------
# Forward wrapper
# ----------------------------------------------------------------------------
def forward_pallas(x_nhwc, p):
    N, H, W, Cin = x_nhwc.shape
    Cout = p["w1"].shape[-1]
    f32 = jnp.float32
    Wci, Wco, Wcd = W * Cin, W * Cout, (W // 2) * Cout

    x2d = x_nhwc.reshape(N, H, Wci).astype(f32)        # free: NHWC row-major == (N,H,W*C)

    # -- weight folding (trace-time, tiny) --
    w1b, wb1b = band3x3(p["w1"], W), band3x3(p["wb1"], W)
    wb2b, w2b = band3x3(p["wb2"], W), band3x3(p["w2"], W)
    wsb = band1x1(p["ws"], W)
    wdb = band1x1_stride2(p["wd"], W)
    srow = jnp.eye(H, dtype=f32)[::2, :]                               # (H//2, H)
    gmat = jnp.kron(jnp.ones((W, 1), f32), jnp.eye(Cout, dtype=f32))   # (Wco, Cout)

    b1r, bb1r = tile_row(p["b1"], W), tile_row(p["bb1"], W)
    bb2r, bsr = tile_row(p["bb2"], W), tile_row(p["bs"], W)
    b2r, bdr = tile_row(p["b2"], W), tile_row(p["bd"], W // 2)

    par = pltpu.CompilerParams(dimension_semantics=("parallel",))

    # ---- phase 1: conv_relu1 + conv_block conv#1 + per-image BN partial stats ----
    t2d, stats = pl.pallas_call(
        _front_kernel,
        out_shape=(jax.ShapeDtypeStruct((N, H, Wco), f32),
                   jax.ShapeDtypeStruct((N, 2, Cout), f32)),
        grid=(N,),
        in_specs=[
            pl.BlockSpec((pl.Squeezed(), H, Wci), lambda n: (n, 0, 0)),   # x
            pl.BlockSpec((3, Wci, Wco), lambda n: (0, 0, 0)),             # w1 band
            pl.BlockSpec((1, Wco), lambda n: (0, 0)),                     # b1 row
            pl.BlockSpec((3, Wco, Wco), lambda n: (0, 0, 0)),             # wb1 band
            pl.BlockSpec((1, Wco), lambda n: (0, 0)),                     # bb1 row
            pl.BlockSpec((Wco, Cout), lambda n: (0, 0)),                  # channel gather
        ],
        out_specs=(pl.BlockSpec((pl.Squeezed(), H, Wco), lambda n: (n, 0, 0)),
                   pl.BlockSpec((pl.Squeezed(), 2, Cout), lambda n: (n, 0, 0))),
        scratch_shapes=[pltpu.VMEM((H + 2, Wci), f32),
                        pltpu.VMEM((H + 2, Wco), f32)],
        compiler_params=par,
    )(x2d, w1b, b1r, wb1b, bb1r, gmat)

    # ---- BatchNorm2d batch statistics (training-mode forward), O(C) glue ----
    count = N * H * W
    mean = jnp.sum(stats[:, 0, :], axis=0) / count
    var = jnp.sum(stats[:, 1, :], axis=0) / count - mean * mean        # biased variance
    scale = p["gamma"] / jnp.sqrt(var + EPS)
    shift = p["beta"] - mean * scale
    bnsc, bnsh = tile_row(scale, W), tile_row(shift, W)

    # ---- phase 2: BN+ReLU, conv_block conv#2, shortcut add, conv_relu2, down ----
    out2d, down2d = pl.pallas_call(
        _back_kernel,
        out_shape=(jax.ShapeDtypeStruct((N, H, Wco), f32),
                   jax.ShapeDtypeStruct((N, H // 2, Wcd), f32)),
        grid=(N,),
        in_specs=[
            pl.BlockSpec((pl.Squeezed(), H, Wco), lambda n: (n, 0, 0)),   # t
            pl.BlockSpec((pl.Squeezed(), H, Wci), lambda n: (n, 0, 0)),   # x (for shortcut)
            pl.BlockSpec((1, Wco), lambda n: (0, 0)),                     # BN scale row
            pl.BlockSpec((1, Wco), lambda n: (0, 0)),                     # BN shift row
            pl.BlockSpec((3, Wco, Wco), lambda n: (0, 0, 0)),             # wb2 band
            pl.BlockSpec((1, Wco), lambda n: (0, 0)),                     # bb2 row
            pl.BlockSpec((Wci, Wco), lambda n: (0, 0)),                   # shortcut band
            pl.BlockSpec((1, Wco), lambda n: (0, 0)),                     # bs row
            pl.BlockSpec((3, Wco, Wco), lambda n: (0, 0, 0)),             # w2 band
            pl.BlockSpec((1, Wco), lambda n: (0, 0)),                     # b2 row
            pl.BlockSpec((H // 2, H), lambda n: (0, 0)),                  # row selector S
            pl.BlockSpec((Wco, Wcd), lambda n: (0, 0)),                   # down band D
            pl.BlockSpec((1, Wcd), lambda n: (0, 0)),                     # bd row
        ],
        out_specs=(pl.BlockSpec((pl.Squeezed(), H, Wco), lambda n: (n, 0, 0)),
                   pl.BlockSpec((pl.Squeezed(), H // 2, Wcd), lambda n: (n, 0, 0))),
        scratch_shapes=[pltpu.VMEM((H + 2, Wco), f32),
                        pltpu.VMEM((H + 2, Wco), f32)],
        compiler_params=par,
    )(t2d, x2d, bnsc, bnsh, wb2b, bb2r, wsb, bsr, w2b, b2r, srow, wdb, bdr)

    out = out2d.reshape(N, H, W, Cout)
    down = down2d.reshape(N, H // 2, W // 2, Cout)
    return out, down


# ----------------------------------------------------------------------------
# Pure-JAX reference (same math) for verification
# ----------------------------------------------------------------------------
def _conv_ref(x, w, b, stride=1, padding=0):
    y = jax.lax.conv_general_dilated(
        x, w, (stride, stride), [(padding, padding)] * 2,
        dimension_numbers=("NHWC", "HWIO", "NHWC"),
        precision=jax.lax.Precision.HIGHEST)
    return y + b[None, None, None, :]


def forward_ref(x, p):
    x1 = jax.nn.relu(_conv_ref(x, p["w1"], p["b1"], padding=1))
    t = _conv_ref(x1, p["wb1"], p["bb1"], padding=1)
    mean = t.mean(axis=(0, 1, 2), keepdims=True)
    var = ((t - mean) ** 2).mean(axis=(0, 1, 2), keepdims=True)
    tb = jax.nn.relu((t - mean) / jnp.sqrt(var + EPS) * p["gamma"] + p["beta"])
    x2 = _conv_ref(tb, p["wb2"], p["bb2"], padding=1)
    x_short = _conv_ref(x, p["ws"][None, None], p["bs"], padding=0)
    x3 = x_short + x2
    out = jax.nn.relu(_conv_ref(x3, p["w2"], p["b2"], padding=1))
    down = _conv_ref(out, p["wd"][None, None], p["bd"], stride=2, padding=0)
    return out, down


# ----------------------------------------------------------------------------
if __name__ == "__main__":
    N, Cin, Cout, H, W = 2, 4, 8, 16, 16

    key = jax.random.PRNGKey(0)
    ks = jax.random.split(key, 16)

    def w3(k, ci, co):
        return jax.random.normal(k, (3, 3, ci, co), jnp.float32) * 0.1

    def vec(k, c):
        return jax.random.normal(k, (c,), jnp.float32) * 0.1

    params = {
        "w1": w3(ks[1], Cin, Cout),  "b1": vec(ks[2], Cout),        # conv_relu1
        "wb1": w3(ks[3], Cout, Cout), "bb1": vec(ks[4], Cout),      # conv_block conv #1
        "gamma": 1.0 + vec(ks[5], Cout), "beta": vec(ks[6], Cout),  # BatchNorm2d affine
        "wb2": w3(ks[7], Cout, Cout), "bb2": vec(ks[8], Cout),      # conv_block conv #2
        "ws": jax.random.normal(ks[9], (Cin, Cout), jnp.float32) * 0.1,
        "bs": vec(ks[10], Cout),                                    # shortcut 1x1
        "w2": w3(ks[11], Cout, Cout), "b2": vec(ks[12], Cout),      # conv_relu2
        "wd": jax.random.normal(ks[13], (Cout, Cout), jnp.float32) * 0.1,
        "bd": vec(ks[14], Cout),                                    # down 1x1 stride 2
    }

    # PyTorch-style NCHW input, transposed to NHWC for the kernels.
    x_nchw = jax.random.normal(ks[0], (N, Cin, H, W), jnp.float32)
    x_nhwc = jnp.transpose(x_nchw, (0, 2, 3, 1))

    out, down = forward_pallas(x_nhwc, params)
    jax.block_until_ready((out, down))

    ref_out, ref_down = forward_ref(x_nhwc, params)
    np.testing.assert_allclose(np.asarray(out), np.asarray(ref_out), atol=1e-3, rtol=1e-3)
    np.testing.assert_allclose(np.asarray(down), np.asarray(ref_down), atol=1e-3, rtol=1e-3)

    # Back to PyTorch NCHW convention for the returned tensors.
    out_nchw = jnp.transpose(out, (0, 3, 1, 2))     # (2, 8, 16, 16)
    down_nchw = jnp.transpose(down, (0, 3, 1, 2))   # (2, 8, 8, 8)
    jax.block_until_ready((out_nchw, down_nchw))

    print("KERNEL_OK")
</pallas_src>

<mosaic_0001>
module attributes {stable_mosaic.version = 11 : i64} {
  func.func @_front_kernel(%arg0: i32, %arg1: memref<1x16x64xf32, #tpu.memory_space<vmem>>, %arg2: memref<3x64x128xf32, #tpu.memory_space<vmem>>, %arg3: memref<1x128xf32, #tpu.memory_space<vmem>>, %arg4: memref<3x128x128xf32, #tpu.memory_space<vmem>>, %arg5: memref<1x128xf32, #tpu.memory_space<vmem>>, %arg6: memref<128x8xf32, #tpu.memory_space<vmem>>, %arg7: memref<1x16x128xf32, #tpu.memory_space<vmem>>, %arg8: memref<1x2x8xf32, #tpu.memory_space<vmem>>, %arg9: memref<18x64xf32, #tpu.memory_space<vmem>>, %arg10: memref<18x128xf32, #tpu.memory_space<vmem>>) attributes {dimension_semantics = [#tpu.dimension_semantics<parallel>], iteration_bounds = array<i64: 2>, scalar_prefetch = 0 : i64, scratch_operands = 2 : i64, tpu.core_type = #tpu.core_type<tc>, window_params = [{transform_indices = @transform_0, window_bounds = array<i64: 1, 16, 64>}, {pipeline_mode = #tpu.pipeline_mode<synchronous>, transform_indices = @transform_1, window_bounds = array<i64: 3, 64, 128>}, {pipeline_mode = #tpu.pipeline_mode<synchronous>, transform_indices = @transform_2, window_bounds = array<i64: 1, 128>}, {pipeline_mode = #tpu.pipeline_mode<synchronous>, transform_indices = @transform_3, window_bounds = array<i64: 3, 128, 128>}, {pipeline_mode = #tpu.pipeline_mode<synchronous>, transform_indices = @transform_4, window_bounds = array<i64: 1, 128>}, {pipeline_mode = #tpu.pipeline_mode<synchronous>, transform_indices = @transform_5, window_bounds = array<i64: 128, 8>}, {transform_indices = @transform_6, window_bounds = array<i64: 1, 16, 128>}, {transform_indices = @transform_7, window_bounds = array<i64: 1, 2, 8>}]} {
    %c0 = arith.constant 0 : index
    %c0_0 = arith.constant 0 : index
    %c0_1 = arith.constant 0 : index
    %0 = vector.load %arg1[%c0, %c0_0, %c0_1] : memref<1x16x64xf32, #tpu.memory_space<vmem>>, vector<1x16x64xf32>
    %1 = vector.shape_cast %0 : vector<1x16x64xf32> to vector<16x64xf32>
    %cst = arith.constant 0.000000e+00 : f32
    %2 = vector.broadcast %cst : f32 to vector<1x64xf32>
    %c0_2 = arith.constant 0 : index
    %c0_3 = arith.constant 0 : index
    %3 = vector.load %arg9[%c0_2, %c0_3] : memref<18x64xf32, #tpu.memory_space<vmem>>, vector<1x64xf32>
    tpu.vector_store %arg9[%c0_2, %c0_3], %2 {strides = array<i32>} : memref<18x64xf32, #tpu.memory_space<vmem>>, vector<1x64xf32>,
    %c17 = arith.constant 17 : index
    %c0_4 = arith.constant 0 : index
    %4 = vector.load %arg9[%c17, %c0_4] : memref<18x64xf32, #tpu.memory_space<vmem>>, vector<1x64xf32>
    tpu.vector_store %arg9[%c17, %c0_4], %2 {strides = array<i32>} : memref<18x64xf32, #tpu.memory_space<vmem>>, vector<1x64xf32>,
    %c1 = arith.constant 1 : index
    %c0_5 = arith.constant 0 : index
    %5 = vector.load %arg9[%c1, %c0_5] : memref<18x64xf32, #tpu.memory_space<vmem>>, vector<16x64xf32>
    tpu.vector_store %arg9[%c1, %c0_5], %1 {strides = array<i32>} : memref<18x64xf32, #tpu.memory_space<vmem>>, vector<16x64xf32>,
    %c0_6 = arith.constant 0 : index
    %c0_7 = arith.constant 0 : index
    %6 = vector.load %arg9[%c0_6, %c0_7] : memref<18x64xf32, #tpu.memory_space<vmem>>, vector<16x64xf32>
    %c0_8 = arith.constant 0 : index
    %c0_9 = arith.constant 0 : index
    %c0_10 = arith.constant 0 : index
    %7 = vector.load %arg2[%c0_8, %c0_9, %c0_10] : memref<3x64x128xf32, #tpu.memory_space<vmem>>, vector<1x64x128xf32>
    %8 = vector.shape_cast %7 : vector<1x64x128xf32> to vector<64x128xf32>
    %cst_11 = arith.constant dense<0.000000e+00> : vector<16x128xf32>
    %9 = tpu.matmul %6, %8, %cst_11 {dimension_numbers = #tpu.dot_dimension_numbers<[1], [0], [0], [1], [0, 0, 1, 1], [], []>} : vector<16x64xf32>, vector<64x128xf32>, vector<16x128xf32> -> vector<16x128xf32>
    %c1_12 = arith.constant 1 : index
    %c0_13 = arith.constant 0 : index
    %10 = vector.load %arg9[%c1_12, %c0_13] : memref<18x64xf32, #tpu.memory_space<vmem>>, vector<16x64xf32>
    %c1_14 = arith.constant 1 : index
    %c0_15 = arith.constant 0 : index
    %c0_16 = arith.constant 0 : index
    %11 = vector.load %arg2[%c1_14, %c0_15, %c0_16] : memref<3x64x128xf32, #tpu.memory_space<vmem>>, vector<1x64x128xf32>
    %12 = vector.shape_cast %11 : vector<1x64x128xf32> to vector<64x128xf32>
    %cst_17 = arith.constant dense<0.000000e+00> : vector<16x128xf32>
    %13 = tpu.matmul %10, %12, %cst_17 {dimension_numbers = #tpu.dot_dimension_numbers<[1], [0], [0], [1], [0, 0, 1, 1], [], []>} : vector<16x64xf32>, vector<64x128xf32>, vector<16x128xf32> -> vector<16x128xf32>
    %14 = arith.addf %9, %13 : vector<16x128xf32>
    %c2 = arith.constant 2 : index
    %c0_18 = arith.constant 0 : index
    %15 = vector.load %arg9[%c2, %c0_18] : memref<18x64xf32, #tpu.memory_space<vmem>>, vector<16x64xf32>
    %c2_19 = arith.constant 2 : index
    %c0_20 = arith.constant 0 : index
    %c0_21 = arith.constant 0 : index
    %16 = vector.load %arg2[%c2_19, %c0_20, %c0_21] : memref<3x64x128xf32, #tpu.memory_space<vmem>>, vector<1x64x128xf32>
    %17 = vector.shape_cast %16 : vector<1x64x128xf32> to vector<64x128xf32>
    %cst_22 = arith.constant dense<0.000000e+00> : vector<16x128xf32>
    %18 = tpu.matmul %15, %17, %cst_22 {dimension_numbers = #tpu.dot_dimension_numbers<[1], [0], [0], [1], [0, 0, 1, 1], [], []>} : vector<16x64xf32>, vector<64x128xf32>, vector<16x128xf32> -> vector<16x128xf32>
    %19 = arith.addf %14, %18 : vector<16x128xf32>
    %c0_23 = arith.constant 0 : index
    %c0_24 = arith.constant 0 : index
    %20 = vector.load %arg3[%c0_23, %c0_24] : memref<1x128xf32, #tpu.memory_space<vmem>>, vector<1x128xf32>
    %21 = vector.broadcast %20 : vector<1x128xf32> to vector<16x128xf32>
    %22 = arith.addf %19, %21 : vector<16x128xf32>
    %cst_25 = arith.constant 0.000000e+00 : f32
    %23 = vector.broadcast %cst_25 : f32 to vector<16x128xf32>
    %24 = arith.maximumf %22, %23 : vector<16x128xf32>
    %cst_26 = arith.constant 0.000000e+00 : f32
    %25 = vector.broadcast %cst_26 : f32 to vector<1x128xf32>
    %c0_27 = arith.constant 0 : index
    %c0_28 = arith.constant 0 : index
    %26 = vector.load %arg10[%c0_27, %c0_28] : memref<18x128xf32, #tpu.memory_space<vmem>>, vector<1x128xf32>
    tpu.vector_store %arg10[%c0_27, %c0_28], %25 {strides = array<i32>} : memref<18x128xf32, #tpu.memory_space<vmem>>, vector<1x128xf32>,
    %c17_29 = arith.constant 17 : index
    %c0_30 = arith.constant 0 : index
    %27 = vector.load %arg10[%c17_29, %c0_30] : memref<18x128xf32, #tpu.memory_space<vmem>>, vector<1x128xf32>
    tpu.vector_store %arg10[%c17_29, %c0_30], %25 {strides = array<i32>} : memref<18x128xf32, #tpu.memory_space<vmem>>, vector<1x128xf32>,
    %c1_31 = arith.constant 1 : index
    %c0_32 = arith.constant 0 : index
    %28 = vector.load %arg10[%c1_31, %c0_32] : memref<18x128xf32, #tpu.memory_space<vmem>>, vector<16x128xf32>
    tpu.vector_store %arg10[%c1_31, %c0_32], %24 {strides = array<i32>} : memref<18x128xf32, #tpu.memory_space<vmem>>, vector<16x128xf32>,
    %c0_33 = arith.constant 0 : index
    %c0_34 = arith.constant 0 : index
    %29 = vector.load %arg10[%c0_33, %c0_34] : memref<18x128xf32, #tpu.memory_space<vmem>>, vector<16x128xf32>
    %c0_35 = arith.constant 0 : index
    %c0_36 = arith.constant 0 : index
    %c0_37 = arith.constant 0 : index
    %30 = vector.load %arg4[%c0_35, %c0_36, %c0_37] : memref<3x128x128xf32, #tpu.memory_space<vmem>>, vector<1x128x128xf32>
    %31 = vector.shape_cast %30 : vector<1x128x128xf32> to vector<128x128xf32>
    %cst_38 = arith.constant dense<0.000000e+00> : vector<16x128xf32>
    %32 = tpu.matmul %29, %31, %cst_38 {dimension_numbers = #tpu.dot_dimension_numbers<[1], [0], [0], [1], [0, 0, 1, 1], [], []>} : vector<16x128xf32>, vector<128x128xf32>, vector<16x128xf32> -> vector<16x128xf32>
    %c1_39 = arith.constant 1 : index
    %c0_40 = arith.constant 0 : index
    %33 = vector.load %arg10[%c1_39, %c0_40] : memref<18x128xf32, #tpu.memory_space<vmem>>, vector<16x128xf32>
    %c1_41 = arith.constant 1 : index
    %c0_42 = arith.constant 0 : index
    %c0_43 = arith.constant 0 : index
    %34 = vector.load %arg4[%c1_41, %c0_42, %c0_43] : memref<3x128x128xf32, #tpu.memory_space<vmem>>, vector<1x128x128xf32>
    %35 = vector.shape_cast %34 : vector<1x128x128xf32> to vector<128x128xf32>
    %cst_44 = arith.constant dense<0.000000e+00> : vector<16x128xf32>
    %36 = tpu.matmul %33, %35, %cst_44 {dimension_numbers = #tpu.dot_dimension_numbers<[1], [0], [0], [1], [0, 0, 1, 1], [], []>} : vector<16x128xf32>, vector<128x128xf32>, vector<16x128xf32> -> vector<16x128xf32>
    %37 = arith.addf %32, %36 : vector<16x128xf32>
    %c2_45 = arith.constant 2 : index
    %c0_46 = arith.constant 0 : index
    %38 = vector.load %arg10[%c2_45, %c0_46] : memref<18x128xf32, #tpu.memory_space<vmem>>, vector<16x128xf32>
    %c2_47 = arith.constant 2 : index
    %c0_48 = arith.constant 0 : index
    %c0_49 = arith.constant 0 : index
    %39 = vector.load %arg4[%c2_47, %c0_48, %c0_49] : memref<3x128x128xf32, #tpu.memory_space<vmem>>, vector<1x128x128xf32>
    %40 = vector.shape_cast %39 : vector<1x128x128xf32> to vector<128x128xf32>
    %cst_50 = arith.constant dense<0.000000e+00> : vector<16x128xf32>
    %41 = tpu.matmul %38, %40, %cst_50 {dimension_numbers = #tpu.dot_dimension_numbers<[1], [0], [0], [1], [0, 0, 1, 1], [], []>} : vector<16x128xf32>, vector<128x128xf32>, vector<16x128xf32> -> vector<16x128xf32>
    %42 = arith.addf %37, %41 : vector<16x128xf32>
    %c0_51 = arith.constant 0 : index
    %c0_52 = arith.constant 0 : index
    %43 = vector.load %arg5[%c0_51, %c0_52] : memref<1x128xf32, #tpu.memory_space<vmem>>, vector<1x128xf32>
    %44 = vector.broadcast %43 : vector<1x128xf32> to vector<16x128xf32>
    %45 = arith.addf %42, %44 : vector<16x128xf32>
    %c0_53 = arith.constant 0 : index
    %c0_54 = arith.constant 0 : index
    %c0_55 = arith.constant 0 : index
    %46 = vector.load %arg7[%c0_53, %c0_54, %c0_55] : memref<1x16x128xf32, #tpu.memory_space<vmem>>, vector<1x16x128xf32>
    %47 = vector.shape_cast %46 : vector<1x16x128xf32> to vector<16x128xf32>
    %48 = vector.shape_cast %45 : vector<16x128xf32> to vector<1x16x128xf32>
    tpu.vector_store %arg7[%c0_53, %c0_54, %c0_55], %48 {strides = array<i32>} : memref<1x16x128xf32, #tpu.memory_space<vmem>>, vector<1x16x128xf32>,
    %c0_56 = arith.constant 0 : index
    %c0_57 = arith.constant 0 : index
    %49 = vector.load %arg6[%c0_56, %c0_57] : memref<128x8xf32, #tpu.memory_space<vmem>>, vector<128x8xf32>
    %cst_58 = arith.constant dense<0.000000e+00> : vector<16x8xf32>
    %50 = tpu.matmul %45, %49, %cst_58 {dimension_numbers = #tpu.dot_dimension_numbers<[1], [0], [0], [1], [0, 0, 1, 1], [], []>} : vector<16x128xf32>, vector<128x8xf32>, vector<16x8xf32> -> vector<16x8xf32>
    %cst_59 = arith.constant dense<0.000000e+00> : vector<8xf32>
    %51 = vector.multi_reduction <add>, %50, %cst_59 [0] : vector<16x8xf32> to vector<8xf32>
    %52 = vector.shape_cast %51 : vector<8xf32> to vector<1x8xf32>
    %53 = arith.mulf %45, %45 : vector<16x128xf32>
    %c0_60 = arith.constant 0 : index
    %c0_61 = arith.constant 0 : index
    %54 = vector.load %arg6[%c0_60, %c0_61] : memref<128x8xf32, #tpu.memory_space<vmem>>, vector<128x8xf32>
    %cst_62 = arith.constant dense<0.000000e+00> : vector<16x8xf32>
    %55 = tpu.matmul %53, %54, %cst_62 {dimension_numbers = #tpu.dot_dimension_numbers<[1], [0], [0], [1], [0, 0, 1, 1], [], []>} : vector<16x128xf32>, vector<128x8xf32>, vector<16x8xf32> -> vector<16x8xf32>
    %cst_63 = arith.constant dense<0.000000e+00> : vector<8xf32>
    %56 = vector.multi_reduction <add>, %55, %cst_63 [0] : vector<16x8xf32> to vector<8xf32>
    %57 = vector.shape_cast %56 : vector<8xf32> to vector<1x8xf32>
    %c0_64 = arith.constant 0 : index
    %c0_65 = arith.constant 0 : index
    %c0_66 = arith.constant 0 : index
    %58 = vector.load %arg8[%c0_64, %c0_65, %c0_66] : memref<1x2x8xf32, #tpu.memory_space<vmem>>, vector<1x1x8xf32>
    %59 = vector.shape_cast %58 : vector<1x1x8xf32> to vector<1x8xf32>
    %60 = vector.shape_cast %52 : vector<1x8xf32> to vector<1x1x8xf32>
    tpu.vector_store %arg8[%c0_64, %c0_65, %c0_66], %60 {strides = array<i32>} : memref<1x2x8xf32, #tpu.memory_space<vmem>>, vector<1x1x8xf32>,
    %c0_67 = arith.constant 0 : index
    %c1_68 = arith.constant 1 : index
    %c0_69 = arith.constant 0 : index
    %61 = vector.load %arg8[%c0_67, %c1_68, %c0_69] : memref<1x2x8xf32, #tpu.memory_space<vmem>>, vector<1x1x8xf32>
    %62 = vector.shape_cast %61 : vector<1x1x8xf32> to vector<1x8xf32>
    %63 = vector.shape_cast %57 : vector<1x8xf32> to vector<1x1x8xf32>
    tpu.vector_store %arg8[%c0_67, %c1_68, %c0_69], %63 {strides = array<i32>} : memref<1x2x8xf32, #tpu.memory_space<vmem>>, vector<1x1x8xf32>,
    return
  }
  func.func @transform_0(%arg0: i32) -> (i32, i32, i32) {
    %c0_i32 = arith.constant 0 : i32
    %c0_i32_0 = arith.constant 0 : i32
    %c0_i32_1 = arith.constant 0 : i32
    return %arg0, %c0_i32, %c0_i32_0 : i32, i32, i32
  }
  func.func @transform_1(%arg0: i32) -> (i32, i32, i32) {
    %c0_i32 = arith.constant 0 : i32
    %c0_i32_0 = arith.constant 0 : i32
    %c0_i32_1 = arith.constant 0 : i32
    %c0_i32_2 = arith.constant 0 : i32
    return %c0_i32, %c0_i32_0, %c0_i32_1 : i32, i32, i32
  }
  func.func @transform_2(%arg0: i32) -> (i32, i32) {
    %c0_i32 = arith.constant 0 : i32
    %c0_i32_0 = arith.constant 0 : i32
    %c0_i32_1 = arith.constant 0 : i32
    return %c0_i32, %c0_i32_0 : i32, i32
  }
  func.func @transform_3(%arg0: i32) -> (i32, i32, i32) {
    %c0_i32 = arith.constant 0 : i32
    %c0_i32_0 = arith.constant 0 : i32
    %c0_i32_1 = arith.constant 0 : i32
    %c0_i32_2 = arith.constant 0 : i32
    return %c0_i32, %c0_i32_0, %c0_i32_1 : i32, i32, i32
  }
  func.func @transform_4(%arg0: i32) -> (i32, i32) {
    %c0_i32 = arith.constant 0 : i32
    %c0_i32_0 = arith.constant 0 : i32
    %c0_i32_1 = arith.constant 0 : i32
    return %c0_i32, %c0_i32_0 : i32, i32
  }
  func.func @transform_5(%arg0: i32) -> (i32, i32) {
    %c0_i32 = arith.constant 0 : i32
    %c0_i32_0 = arith.constant 0 : i32
    %c0_i32_1 = arith.constant 0 : i32
    return %c0_i32, %c0_i32_0 : i32, i32
  }
  func.func @transform_6(%arg0: i32) -> (i32, i32, i32) {
    %c0_i32 = arith.constant 0 : i32
    %c0_i32_0 = arith.constant 0 : i32
    %c0_i32_1 = arith.constant 0 : i32
    return %arg0, %c0_i32, %c0_i32_0 : i32, i32, i32
  }
  func.func @transform_7(%arg0: i32) -> (i32, i32, i32) {
    %c0_i32 = arith.constant 0 : i32
    %c0_i32_0 = arith.constant 0 : i32
    %c0_i32_1 = arith.constant 0 : i32
    return %arg0, %c0_i32, %c0_i32_0 : i32, i32, i32
  }
}

</mosaic_0001>

<llo_original>
// kernel: tpu_custom_call.1
$region0: #{tpu_custom_call.1}
  #allocation0 [shape = 'u32[]', space=smem, size = 0x4, offset = 0x4, fixed_abs, tag = 'smem constant byte address 0x4 - core index']
  #allocation1 [shape = 'u32[144,128]{1,0:T(1,128)}', space=vmem, size = 0x12000, scoped, tag = 'internal scratch']
  #allocation2 [shape = 'f32[18,64]{1,0:T(8,128)}', space=vmem, size = 0x3000, scoped, tag = 'scratch operand']
  #allocation3 [shape = 'f32[18,128]{1,0:T(8,128)}', space=vmem, size = 0x3000, scoped, tag = 'scratch operand']
  %s0 = inlined_call_operand.vmem [shape: f32[2,16,64], index: 0, kind: input, shape index: {}]
  %s1 = inlined_call_operand.hbm [shape: f32[3,64,128], index: 1, kind: input, shape index: {}]
  %s2 = inlined_call_operand.vmem [shape: f32[1,128], index: 2, kind: input, shape index: {}]
  %s3 = inlined_call_operand.hbm [shape: f32[3,128,128], index: 3, kind: input, shape index: {}]
  %s4 = inlined_call_operand.vmem [shape: f32[1,128], index: 4, kind: input, shape index: {}]
  %s5 = inlined_call_operand.vmem [shape: f32[128,8], index: 5, kind: input, shape index: {}]
  %s6 = inlined_call_operand.hbm [shape: f32[2,16,128], index: 6, kind: output, shape index: {0}]
  %s7 = inlined_call_operand.hbm [shape: f32[2,2,8], index: 7, kind: output, shape index: {1}]
  %8 = xla_tuple %s6, %s7
  %s9 = sld [smem:[#allocation0]]
  $region73: #{tpu_custom_call.1} parent=0
    _
  %s11 = ssub.s32 1, %s9
  %s12 = scalar_select 0, %s11, %s9
  $region1: #{tpu_custom_call.1} parent=0
    #allocation4 [shape = 'u8[98304]{0}', space=vmem, size = 0x18000, scoped, tag = 'input window, operand 1, single buffered']
    #allocation5 [shape = 's32[2]{0}', space=sflag, size = 0x8, scoped, tag = 'scoped memory for tpu_custom_call.1']
    #allocation6 [shape = 's32[2]{0}', space=sflag, size = 0x8, scoped, tag = 'scoped memory for tpu_custom_call.1']
    #allocation7 [shape = 'u8[196608]{0}', space=vmem, size = 0x30000, scoped, tag = 'input window, operand 3, single buffered']
    #allocation8 [shape = 's32[1]{0}', space=sflag, size = 0x4, scoped, tag = 'scoped memory for tpu_custom_call.1']
    #allocation9 [shape = 'u8[16384]{0}', space=vmem, size = 0x4000, scoped, tag = 'output window, operand 0']
    #allocation10 [shape = 'u8[2048]{0}', space=vmem, size = 0x800, scoped, tag = 'output window, operand 1']
    #allocation11 [shape = 's32[2]{0}', space=sflag, size = 0x8, scoped, tag = 'scoped memory for tpu_custom_call.1']
    %13 = vsyncpa [#allocation5], 0
    %14 = vsyncpa [#allocation8], 0
    %15 = vsyncpa [#allocation6], 0
    %s16 = scalar_lea.sflag [#allocation6], 1
    %17 = vsyncpa %s16, 0
    %18 = vsyncpa [#allocation11], 0
    %s19 = scalar_lea.sflag [#allocation11], 1
    %20 = vsyncpa %s19, 0
    loop: start=0, step=1, limit=4
    $region2: #{tpu_custom_call.1} parent=1 // loop_pre_header
      _
    $region3: #{tpu_custom_call.1} parent=1 // loop_header
      %s22 = sphi 0, %s26
      %p23 = scmp.ge.s32.totalorder %s22, 4
      %s32 = sphi 0, %s34
      %s35 = sphi 0, %s32
      %s36 = sphi 0, %s35
      %s52 = sphi 0, %s36
      %s56 = sphi 0, %s56
      %s58 = sphi 0, %s56
      %s59 = sphi 0, %s58
      %s73 = sphi 0, %s59
      %s77 = sphi 0, %s77
      %s79 = sphi 0, %s77
      %s80 = sphi 0, %s79
      %s94 = sphi 0, %s80
      %s98 = sphi 0, %s98
      %s100 = sphi 0, %s98
      %s101 = sphi 0, %s100
      %s115 = sphi 0, %s101
      %s119 = sphi 0, %s119
      %s121 = sphi 0, %s119
      %s122 = sphi 0, %s121
      %s136 = sphi 0, %s122
      %s140 = sphi 0, %s140
      %s142 = sphi 0, %s140
      %s143 = sphi 0, %s142
      %s157 = sphi 0, %s143
      %s163 = sphi 0, %s165
      %s166 = sphi 0, %s163
      %s167 = sphi 0, %s166
      %s183 = sphi 0, %s167
      %s189 = sphi 0, %s191
      %s192 = sphi 0, %s189
      %s193 = sphi 0, %s192
      %s209 = sphi 0, %s193
    $region4: #{tpu_custom_call.1} parent=1 // loop_header_branch
      %25 = sbr.rel (%p23) target = $region8
    $region5: #{tpu_custom_call.1} parent=1 // loop_body
      %s27 = ssub.s32 %s22, 1
      %s28 = ssub.s32 %s22, 2
      %s29 = sadd.s32 %s22, 1
      %s30 = ssub.s32 %s22, %s29
      %p31 = scmp.eq.s32.totalorder %s30, 0
      %s33 = sadd.s32 %s32, 1
      %s34 = scalar_select %p31, %s32, %s33
      %p37 = pneg %p31
      %p38 = scmp.eq.s32.totalorder %s22, 1
      %p39 = por %p37, %p38
      %p40 = scmp.ne.s32.totalorder %s32, %s35
      %p41 = scmp.eq.s32.totalorder %s22, 0
      %p42 = por %p40, %p41
      %p43 = scmp.ne.s32.totalorder %s32, %s35
      %p44 = scmp.eq.s32.totalorder %s27, 1
      %p45 = por %p43, %p44
      %p46 = scmp.ne.s32.totalorder %s35, %s36
      %p47 = scmp.eq.s32.totalorder %s27, 0
      %p48 = por %p46, %p47
      %p49 = scmp.ne.s32.totalorder %s35, %s36
      %p50 = scmp.eq.s32.totalorder %s28, 1
      %p51 = por %p49, %p50
      %p53 = scmp.ne.s32.totalorder %s36, %s52
      %p54 = scmp.eq.s32.totalorder %s28, 0
      %p55 = por %p53, %p54
      %s57 = sadd.s32 %s56, 1
      %p60 = scmp.eq.s32.totalorder %s22, 1
      %p61 = scmp.ne.s32.totalorder %s56, %s58
      %p62 = scmp.eq.s32.totalorder %s22, 0
      %p63 = por %p61, %p62
      %p64 = scmp.ne.s32.totalorder %s56, %s58
      %p65 = scmp.eq.s32.totalorder %s27, 1
      %p66 = por %p64, %p65
      %p67 = scmp.ne.s32.totalorder %s58, %s59
      %p68 = scmp.eq.s32.totalorder %s27, 0
      %p69 = por %p67, %p68
      %p70 = scmp.ne.s32.totalorder %s58, %s59
      %p71 = scmp.eq.s32.totalorder %s28, 1
      %p72 = por %p70, %p71
      %p74 = scmp.ne.s32.totalorder %s59, %s73
      %p75 = scmp.eq.s32.totalorder %s28, 0
      %p76 = por %p74, %p75
      %s78 = sadd.s32 %s77, 1
      %p81 = scmp.eq.s32.totalorder %s22, 1
      %p82 = scmp.ne.s32.totalorder %s77, %s79
      %p83 = scmp.eq.s32.totalorder %s22, 0
      %p84 = por %p82, %p83
      %p85 = scmp.ne.s32.totalorder %s77, %s79
      %p86 = scmp.eq.s32.totalorder %s27, 1
      %p87 = por %p85, %p86
      %p88 = scmp.ne.s32.totalorder %s79, %s80
      %p89 = scmp.eq.s32.totalorder %s27, 0
      %p90 = por %p88, %p89
      %p91 = scmp.ne.s32.totalorder %s79, %s80
      %p92 = scmp.eq.s32.totalorder %s28, 1
      %p93 = por %p91, %p92
      %p95 = scmp.ne.s32.totalorder %s80, %s94
      %p96 = scmp.eq.s32.totalorder %s28, 0
      %p97 = por %p95, %p96
      %s99 = sadd.s32 %s98, 1
      %p102 = scmp.eq.s32.totalorder %s22, 1
      %p103 = scmp.ne.s32.totalorder %s98, %s100
      %p104 = scmp.eq.s32.totalorder %s22, 0
      %p105 = por %p103, %p104
      %p106 = scmp.ne.s32.totalorder %s98, %s100
      %p107 = scmp.eq.s32.totalorder %s27, 1
      %p108 = por %p106, %p107
      %p109 = scmp.ne.s32.totalorder %s100, %s101
      %p110 = scmp.eq.s32.totalorder %s27, 0
      %p111 = por %p109, %p110
      %p112 = scmp.ne.s32.totalorder %s100, %s101
      %p113 = scmp.eq.s32.totalorder %s28, 1
      %p114 = por %p112, %p113
      %p116 = scmp.ne.s32.totalorder %s101, %s115
      %p117 = scmp.eq.s32.totalorder %s28, 0
      %p118 = por %p116, %p117
      %s120 = sadd.s32 %s119, 1
      %p123 = scmp.eq.s32.totalorder %s22, 1
      %p124 = scmp.ne.s32.totalorder %s119, %s121
      %p125 = scmp.eq.s32.totalorder %s22, 0
      %p126 = por %p124, %p125
      %p127 = scmp.ne.s32.totalorder %s119, %s121
      %p128 = scmp.eq.s32.totalorder %s27, 1
      %p129 = por %p127, %p128
      %p130 = scmp.ne.s32.totalorder %s121, %s122
      %p131 = scmp.eq.s32.totalorder %s27, 0
      %p132 = por %p130, %p131
      %p133 = scmp.ne.s32.totalorder %s121, %s122
      %p134 = scmp.eq.s32.totalorder %s28, 1
      %p135 = por %p133, %p134
      %p137 = scmp.ne.s32.totalorder %s122, %s136
      %p138 = scmp.eq.s32.totalorder %s28, 0
      %p139 = por %p137, %p138
      %s141 = sadd.s32 %s140, 1
      %p144 = scmp.eq.s32.totalorder %s22, 1
      %p145 = scmp.ne.s32.totalorder %s140, %s142
      %p146 = scmp.eq.s32.totalorder %s22, 0
      %p147 = por %p145, %p146
      %p148 = scmp.ne.s32.totalorder %s140, %s142
      %p149 = scmp.eq.s32.totalorder %s27, 1
      %p150 = por %p148, %p149
      %p151 = scmp.ne.s32.totalorder %s142, %s143
      %p152 = scmp.eq.s32.totalorder %s27, 0
      %p153 = por %p151, %p152
      %p154 = scmp.ne.s32.totalorder %s142, %s143
      %p155 = scmp.eq.s32.totalorder %s28, 1
      %p156 = por %p154, %p155
      %p158 = scmp.ne.s32.totalorder %s143, %s157
      %p159 = scmp.eq.s32.totalorder %s28, 0
      %p160 = por %p158, %p159
      %s161 = ssub.s32 %s22, %s29
      %p162 = scmp.eq.s32.totalorder %s161, 0
      %s164 = sadd.s32 %s163, 1
      %s165 = scalar_select %p162, %s163, %s164
      %p168 = pneg %p162
      %p169 = scmp.eq.s32.totalorder %s22, 1
      %p170 = por %p168, %p169
      %p171 = scmp.ne.s32.totalorder %s163, %s166
      %p172 = scmp.eq.s32.totalorder %s22, 0
      %p173 = por %p171, %p172
      %p174 = scmp.ne.s32.totalorder %s163, %s166
      %p175 = scmp.eq.s32.totalorder %s27, 1
      %p176 = por %p174, %p175
      %p177 = scmp.ne.s32.totalorder %s166, %s167
      %p178 = scmp.eq.s32.totalorder %s27, 0
      %p179 = por %p177, %p178
      %p180 = scmp.ne.s32.totalorder %s166, %s167
      %p181 = scmp.eq.s32.totalorder %s28, 1
      %p182 = por %p180, %p181
      %p184 = scmp.ne.s32.totalorder %s167, %s183
      %p185 = scmp.eq.s32.totalorder %s28, 0
      %p186 = por %p184, %p185
      %s187 = ssub.s32 %s22, %s29
      %p188 = scmp.eq.s32.totalorder %s187, 0
      %s190 = sadd.s32 %s189, 1
      %s191 = scalar_select %p188, %s189, %s190
      %p194 = pneg %p188
      %p195 = scmp.eq.s32.totalorder %s22, 1
      %p196 = por %p194, %p195
      %p197 = scmp.ne.s32.totalorder %s189, %s192
      %p198 = scmp.eq.s32.totalorder %s22, 0
      %p199 = por %p197, %p198
      %p200 = scmp.ne.s32.totalorder %s189, %s192
      %p201 = scmp.eq.s32.totalorder %s27, 1
      %p202 = por %p200, %p201
      %p203 = scmp.ne.s32.totalorder %s192, %s193
      %p204 = scmp.eq.s32.totalorder %s27, 0
      %p205 = por %p203, %p204
      %p206 = scmp.ne.s32.totalorder %s192, %s193
      %p207 = scmp.eq.s32.totalorder %s28, 1
      %p208 = por %p206, %p207
      %p210 = scmp.ne.s32.totalorder %s193, %s209
      %p211 = scmp.eq.s32.totalorder %s28, 0
      %p212 = por %p210, %p211
      %p213 = scmp.le.s32.totalorder 1, %s22
      %p214 = scmp.lt.s32.totalorder %s22, 3
      %p215 = pnand %p213, %p214
      %p216 = pneg %p215
      // Predicated region
      $region9: #{tpu_custom_call.1} parent=5 // pred_check
        _
      $region10: #{tpu_custom_call.1} parent=5 // pred_check_branch
        %218 = sbr.rel (%p215) target = $region12
      $region11: #{tpu_custom_call.1} parent=5 // pred_region
        %s219 = ssub.s32 %s22, 1
        // Predicated region
        $region13: #{tpu_custom_call.1} parent=11 // pred_check
          %p220 = pneg %p69
        $region14: #{tpu_custom_call.1} parent=11 // pred_check_branch
          %222 = sbr.rel (%p220) target = $region16
        $region15: #{tpu_custom_call.1} parent=11 // pred_region
          %s224 = ssub.s32 3072, 3072
          %225 = vsyncadd [#allocation5], %s224
          %s226 = sshll.u32 [#allocation4], 4
          %s227 = int_to_ptr.vmem [resolvable:$true] %s226
          %232 = dma.hbm_to_vmem [thread:$0]  %s1, 3072, %s227, [#allocation5], 128, 128, 8
        $region16: #{tpu_custom_call.1} parent=11 // pred_fallthru
          _
        // Predicated region
        $region17: #{tpu_custom_call.1} parent=11 // pred_check
          %p233 = pneg %p90
        $region18: #{tpu_custom_call.1} parent=11 // pred_check_branch
          %235 = sbr.rel (%p233) target = $region20
        $region19: #{tpu_custom_call.1} parent=11 // pred_region
          _
        $region20: #{tpu_custom_call.1} parent=11 // pred_fallthru
          _
        // Predicated region
        $region21: #{tpu_custom_call.1} parent=11 // pred_check
          %p236 = pneg %p111
        $region22: #{tpu_custom_call.1} parent=11 // pred_check_branch
          %238 = sbr.rel (%p236) target = $region24
        $region23: #{tpu_custom_call.1} parent=11 // pred_region
          %s240 = ssub.s32 6144, 6144
          %241 = vsyncadd [#allocation8], %s240
          %s242 = sshll.u32 [#allocation7], 4
          %s243 = int_to_ptr.vmem [resolvable:$true] %s242
          %248 = dma.hbm_to_vmem [thread:$0]  %s3, 6144, %s243, [#allocation8], 128, 128, 8
        $region24: #{tpu_custom_call.1} parent=11 // pred_fallthru
          _
        // Predicated region
        $region25: #{tpu_custom_call.1} parent=11 // pred_check
          %p249 = pneg %p132
        $region26: #{tpu_custom_call.1} parent=11 // pred_check_branch
          %251 = sbr.rel (%p249) target = $region28
        $region27: #{tpu_custom_call.1} parent=11 // pred_region
          _
        $region28: #{tpu_custom_call.1} parent=11 // pred_fallthru
          _
        // Predicated region
        $region29: #{tpu_custom_call.1} parent=11 // pred_check
          %p252 = pneg %p153
        $region30: #{tpu_custom_call.1} parent=11 // pred_check_branch
          %254 = sbr.rel (%p252) target = $region32
        $region31: #{tpu_custom_call.1} parent=11 // pred_region
          _
        $region32: #{tpu_custom_call.1} parent=11 // pred_fallthru
          _
      $region12: #{tpu_custom_call.1} parent=5 // pred_fallthru
        _
      %p255 = scmp.lt.s32.totalorder %s22, 2
      // Predicated region
      $region33: #{tpu_custom_call.1} parent=5 // pred_check
        %p256 = pneg %p255
      $region34: #{tpu_custom_call.1} parent=5 // pred_check_branch
        %258 = sbr.rel (%p256) target = $region36
      $region35: #{tpu_custom_call.1} parent=5 // pred_region
        // Predicated region
        $region37: #{tpu_custom_call.1} parent=35 // pred_check
          %p259 = pneg %p42
        $region38: #{tpu_custom_call.1} parent=35 // pred_check_branch
          %261 = sbr.rel (%p259) target = $region40
        $region39: #{tpu_custom_call.1} parent=35 // pred_region
          %p262 = scmp.lt.s32.totalorder %s22, 1
          %s263 = scalar_select %p262, %s22, 1
          %s264 = smul.addr %s263, 2
          %s265 = smul.addr %s264, 8
          %s266 = scalar_lea.vmem %s0, %s265
        $region40: #{tpu_custom_call.1} parent=35 // pred_fallthru
          _
      $region36: #{tpu_custom_call.1} parent=5 // pred_fallthru
        _
      %p267 = scmp.le.s32.totalorder 1, %s22
      %p268 = scmp.lt.s32.totalorder %s22, 3
      %p269 = pnand %p267, %p268
      %p270 = pneg %p269
      // Predicated region
      $region41: #{tpu_custom_call.1} parent=5 // pred_check
        _
      $region42: #{tpu_custom_call.1} parent=5 // pred_check_branch
        %272 = sbr.rel (%p269) target = $region44
      $region43: #{tpu_custom_call.1} parent=5 // pred_region
        %s273 = ssub.s32 %s22, 1
        // Predicated region
        $region45: #{tpu_custom_call.1} parent=43 // pred_check
          %p274 = pneg %p69
        $region46: #{tpu_custom_call.1} parent=43 // pred_check_branch
          %276 = sbr.rel (%p274) target = $region48
        $region47: #{tpu_custom_call.1} parent=43 // pred_region
          %277 = dma.done [#allocation5], 3072
        $region48: #{tpu_custom_call.1} parent=43 // pred_fallthru
          _
        // Predicated region
        $region49: #{tpu_custom_call.1} parent=43 // pred_check
          %p278 = pneg %p111
        $region50: #{tpu_custom_call.1} parent=43 // pred_check_branch
          %280 = sbr.rel (%p278) target = $region52
        $region51: #{tpu_custom_call.1} parent=43 // pred_region
          %281 = dma.done [#allocation8], 6144
        $region52: #{tpu_custom_call.1} parent=43 // pred_fallthru
          _
        %p282 = scmp.lt.s32.totalorder %s27, 1
        %s283 = scalar_select %p282, %s27, 1
        %s284 = smul.addr %s283, 2
        %s285 = smul.addr %s284, 8
        %s286 = scalar_lea.vmem %s0, %s285
        %p287 = pneg %p48
        %p288 = pneg %p45
        %p289 = pneg %p69
        %p290 = pneg %p66
        %p291 = pneg %p90
        %p292 = pneg %p87
        %p293 = pneg %p111
        %p294 = pneg %p108
        %p295 = pneg %p132
        %p296 = pneg %p129
        %p297 = pneg %p153
        %p298 = pneg %p150
        %p299 = pneg %p179
        %p300 = pneg %p176
        %s301 = sand.u32 %s166, 1
        %s302 = scalar_lea.sflag [#allocation6], %s301
        %s303 = sand.u32 %s166, 1
        %s304 = smul.addr %s303, 16
        %s305 = scalar_lea.vmem [#allocation9], %s304
        %p306 = pneg %p205
        %p307 = pneg %p202
        %s308 = sand.u32 %s192, 1
        %s309 = scalar_lea.sflag [#allocation11], %s308
        %s310 = sand.u32 %s192, 1
        %s311 = smul.addr %s310, 2
        %s312 = scalar_lea.vmem [#allocation10], %s311
        %p313 = scmp.lt.s32.totalorder %s27, 1
        %s314 = scalar_select %p313, %s27, 1
        %s315 = smul.addr %s314, 2
        %s316 = smul.addr %s315, 8
        %s317 = scalar_lea.vmem %s0, %s316
        %v318 = vld [vmem:[%s317] sm:$0xff]
        %v319 = vld [vmem:[%s317 + $0x8] sm:$0xff]
        %vm320 = vcmask 516096
        %321 = vst.msk [vmem:[#allocation2] sm:$0x1] %vm320, 0.0
        %322 = vst.msk [vmem:[#allocation2 + $0x11] sm:$0x1] %vm320, 0.0
        %vm323 = vcmask 523264
        %324 = vst.msk [vmem:[#allocation2 + $0x1] sm:$0xff] %vm323, %v318
        %325 = vst.msk [vmem:[#allocation2 + $0x9] sm:$0xff] %vm323, %v319
        %v326 = vld [vmem:[#allocation2] sm:$0xff]
        %v327 = vld [vmem:[#allocation2 + $0x8] sm:$0xff]
        %v328 = vld [vmem:[#allocation4] sm:$0xff]
        %v329 = vld [vmem:[#allocation4 + $0x8] sm:$0xff]
        %v330 = vld [vmem:[#allocation4 + $0x10] sm:$0xff]
        %v331 = vld [vmem:[#allocation4 + $0x18] sm:$0xff]
        %v332 = vld [vmem:[#allocation4 + $0x20] sm:$0xff]
        %v333 = vld [vmem:[#allocation4 + $0x28] sm:$0xff]
        %v334 = vld [vmem:[#allocation4 + $0x30] sm:$0xff]
        %v335 = vld [vmem:[#allocation4 + $0x38] sm:$0xff]
        %v336 = vld [vmem:[#allocation2 + $0x1] sm:$0xff]
        %v337 = vld [vmem:[#allocation2 + $0x9] sm:$0xff]
        %s338 = scalar_lea.vmem [#allocation4], 64
        %v339 = vld [vmem:[%s338] sm:$0xff]
        %v340 = vld [vmem:[%s338 + $0x8] sm:$0xff]
        %v341 = vld [vmem:[%s338 + $0x10] sm:$0xff]
        %v342 = vld [vmem:[%s338 + $0x18] sm:$0xff]
        %v343 = vld [vmem:[%s338 + $0x20] sm:$0xff]
        %v344 = vld [vmem:[%s338 + $0x28] sm:$0xff]
        %v345 = vld [vmem:[%s338 + $0x30] sm:$0xff]
        %v346 = vld [vmem:[%s338 + $0x38] sm:$0xff]
        %v348 = vsel %vm323, %v336, 0
        %v351 = vsel %vm323, %v337, 0
        %353 = vmatprep.subr.mxu0 0.0
        %354 = vmatpush1.msra.mxu0 %v339
        %355 = vmatprep.subr.mxu0 0.0
        %356 = vmatpush1.msra.mxu0 %v340
        %357 = vmatprep.subr.mxu0 0.0
        %358 = vmatpush1.msra.mxu0 %v341
        %359 = vmatprep.subr.mxu0 0.0
        %360 = vmatpush1.msra.mxu0 %v342
        %361 = vmatprep.subr.mxu0 0.0
        %362 = vmatpush1.msra.mxu0 %v343
        %363 = vmatprep.subr.mxu0 0.0
        %364 = vmatpush1.msra.mxu0 %v344
        %365 = vmatprep.subr.mxu0 0.0
        %366 = vmatpush1.msra.mxu0 %v345
        %367 = vmatprep.subr.mxu0 0.0
        %368 = vmatpush1.msra.mxu0 %v346
        %369 = vmatprep.subr.mxu0 0.0
        %370 = vmatpush1.msra.mxu0 0.0
        %371 = vmatprep.subr.mxu0 0.0
        %372 = vmatpush1.msra.mxu0 0.0
        %373 = vmatprep.subr.mxu0 0.0
        %374 = vmatpush1.msra.mxu0 0.0
        %375 = vmatprep.subr.mxu0 0.0
        %376 = vmatpush1.msra.mxu0 0.0
        %377 = vmatprep.subr.mxu0 0.0
        %378 = vmatpush1.msra.mxu0 0.0
        %379 = vmatprep.subr.mxu0 0.0
        %380 = vmatpush1.msra.mxu0 0.0
        %381 = vmatprep.subr.mxu0 0.0
        %382 = vmatpush1.msra.mxu0 0.0
        %383 = vmatprep.subr.mxu0 0.0
        %384 = vmatpush1.msra.mxu0 0.0
        %385 = vmatprep.subr.mxu0 0.0
        %386 = vmatpush1.msra.mxu0 0.0
        %387 = vmatprep.subr.mxu0 0.0
        %388 = vmatpush1.msra.mxu0 0.0
        %389 = vmatprep.subr.mxu0 0.0
        %390 = vmatpush1.msra.mxu0 0.0
        %391 = vmatprep.subr.mxu0 0.0
        %392 = vmatpush1.msra.mxu0 0.0
        %393 = vmatprep.subr.mxu0 0.0
        %394 = vmatpush1.msra.mxu0 0.0
        %395 = vmatprep.subr.mxu0 0.0
        %396 = vmatpush1.msra.mxu0 0.0
        %397 = vmatprep.subr.mxu0 0.0
        %398 = vmatpush1.msra.mxu0 0.0
        %399 = vmatprep.subr.mxu0 0.0
        %400 = vmatpush1.msra.mxu0 0.0
        %401 = vmatprep.subr.mxu0 0.0
        %402 = vmatpush1.msra.mxu0 0.0
        %403 = vmatprep.subr.mxu0 0.0
        %404 = vmatpush1.msra.mxu0 0.0
        %405 = vmatprep.subr.mxu0 0.0
        %406 = vmatpush1.msra.mxu0 0.0
        %407 = vmatprep.subr.mxu0 0.0
        %408 = vmatpush1.msra.mxu0 0.0
        %409 = vmatprep.subr.mxu0 0.0
        %410 = vmatpush1.msra.mxu0 0.0
        %411 = vmatprep.subr.mxu0 0.0
        %412 = vmatpush1.msra.mxu0 0.0
        %413 = vmatprep.subr.mxu0 0.0
        %414 = vmatpush1.msra.mxu0 0.0
        %415 = vmatprep.subr.mxu0 0.0
        %416 = vmatpush1.msra.mxu0 0.0
        %417 = vmatprep.mubr.f32.mxu0 0.0
        %418 = vmatmul.mubr.f32.gmra.mrb[0].mxu0 %v348
        %v419 = vpop.f32.mrb[0].mxu0
        %v420 = vadd.f32 0.0, %v419
        %v421 = vpop.f32.mrb[0].mxu0
        %422 = vmatprep.mubr.f32.mxu0 0.0
        %423 = vmatmul.mubr.f32.gmra.mrb[0].mxu0 %v351
        %v424 = vpop.f32.mrb[0].mxu0
        %v425 = vadd.f32 0.0, %v424
        %v426 = vpop.f32.mrb[0].mxu0
        %427 = vdwg.mxu0
        %v429 = vsel %vm323, %v326, 0
        %v432 = vsel %vm323, %v327, 0
        %434 = vmatprep.subr.mxu0 0.0
        %435 = vmatpush1.msra.mxu0 %v328
        %436 = vmatprep.subr.mxu0 0.0
        %437 = vmatpush1.msra.mxu0 %v329
        %438 = vmatprep.subr.mxu0 0.0
        %439 = vmatpush1.msra.mxu0 %v330
        %440 = vmatprep.subr.mxu0 0.0
        %441 = vmatpush1.msra.mxu0 %v331
        %442 = vmatprep.subr.mxu0 0.0
        %443 = vmatpush1.msra.mxu0 %v332
        %444 = vmatprep.subr.mxu0 0.0
        %445 = vmatpush1.msra.mxu0 %v333
        %446 = vmatprep.subr.mxu0 0.0
        %447 = vmatpush1.msra.mxu0 %v334
        %448 = vmatprep.subr.mxu0 0.0
        %449 = vmatpush1.msra.mxu0 %v335
        %450 = vmatprep.subr.mxu0 0.0
        %451 = vmatpush1.msra.mxu0 0.0
        %452 = vmatprep.subr.mxu0 0.0
        %453 = vmatpush1.msra.mxu0 0.0
        %454 = vmatprep.subr.mxu0 0.0
        %455 = vmatpush1.msra.mxu0 0.0
        %456 = vmatprep.subr.mxu0 0.0
        %457 = vmatpush1.msra.mxu0 0.0
        %458 = vmatprep.subr.mxu0 0.0
        %459 = vmatpush1.msra.mxu0 0.0
        %460 = vmatprep.subr.mxu0 0.0
        %461 = vmatpush1.msra.mxu0 0.0
        %462 = vmatprep.subr.mxu0 0.0
        %463 = vmatpush1.msra.mxu0 0.0
        %464 = vmatprep.subr.mxu0 0.0
        %465 = vmatpush1.msra.mxu0 0.0
        %466 = vmatprep.subr.mxu0 0.0
        %467 = vmatpush1.msra.mxu0 0.0
        %468 = vmatprep.subr.mxu0 0.0
        %469 = vmatpush1.msra.mxu0 0.0
        %470 = vmatprep.subr.mxu0 0.0
        %471 = vmatpush1.msra.mxu0 0.0
        %472 = vmatprep.subr.mxu0 0.0
        %473 = vmatpush1.msra.mxu0 0.0
        %474 = vmatprep.subr.mxu0 0.0
        %475 = vmatpush1.msra.mxu0 0.0
        %476 = vmatprep.subr.mxu0 0.0
        %477 = vmatpush1.msra.mxu0 0.0
        %478 = vmatprep.subr.mxu0 0.0
        %479 = vmatpush1.msra.mxu0 0.0
        %480 = vmatprep.subr.mxu0 0.0
        %481 = vmatpush1.msra.mxu0 0.0
        %482 = vmatprep.subr.mxu0 0.0
        %483 = vmatpush1.msra.mxu0 0.0
        %484 = vmatprep.subr.mxu0 0.0
        %485 = vmatpush1.msra.mxu0 0.0
        %486 = vmatprep.subr.mxu0 0.0
        %487 = vmatpush1.msra.mxu0 0.0
        %488 = vmatprep.subr.mxu0 0.0
        %489 = vmatpush1.msra.mxu0 0.0
        %490 = vmatprep.subr.mxu0 0.0
        %491 = vmatpush1.msra.mxu0 0.0
        %492 = vmatprep.subr.mxu0 0.0
        %493 = vmatpush1.msra.mxu0 0.0
        %494 = vmatprep.subr.mxu0 0.0
        %495 = vmatpush1.msra.mxu0 0.0
        %496 = vmatprep.subr.mxu0 0.0
        %497 = vmatpush1.msra.mxu0 0.0
        %498 = vmatprep.mubr.f32.mxu0 0.0
        %499 = vmatmul.mubr.f32.gmra.mrb[0].mxu0 %v429
        %v500 = vpop.f32.mrb[0].mxu0
        %v501 = vadd.f32 %v420, %v500
        %v502 = vpop.f32.mrb[0].mxu0
        %503 = vmatprep.mubr.f32.mxu0 0.0
        %504 = vmatmul.mubr.f32.gmra.mrb[0].mxu0 %v432
        %v505 = vpop.f32.mrb[0].mxu0
        %v506 = vadd.f32 %v425, %v505
        %v507 = vpop.f32.mrb[0].mxu0
        %508 = vdwg.mxu0
        %v509 = vld [vmem:[#allocation2 + $0x2] sm:$0xff]
        %v510 = vld [vmem:[#allocation2 + $0xa] sm:$0xff]
        %s511 = scalar_lea.vmem [#allocation4], 128
        %v512 = vld [vmem:[%s511] sm:$0xff]
        %v513 = vld [vmem:[%s511 + $0x8] sm:$0xff]
        %v514 = vld [vmem:[%s511 + $0x10] sm:$0xff]
        %v515 = vld [vmem:[%s511 + $0x18] sm:$0xff]
        %v516 = vld [vmem:[%s511 + $0x20] sm:$0xff]
        %v517 = vld [vmem:[%s511 + $0x28] sm:$0xff]
        %v518 = vld [vmem:[%s511 + $0x30] sm:$0xff]
        %v519 = vld [vmem:[%s511 + $0x38] sm:$0xff]
        %v521 = vsel %vm323, %v509, 0
        %v524 = vsel %vm323, %v510, 0
        %526 = vmatprep.subr.mxu0 0.0
        %527 = vmatpush1.msra.mxu0 %v512
        %528 = vmatprep.subr.mxu0 0.0
        %529 = vmatpush1.msra.mxu0 %v513
        %530 = vmatprep.subr.mxu0 0.0
        %531 = vmatpush1.msra.mxu0 %v514
        %532 = vmatprep.subr.mxu0 0.0
        %533 = vmatpush1.msra.mxu0 %v515
        %534 = vmatprep.subr.mxu0 0.0
        %535 = vmatpush1.msra.mxu0 %v516
        %536 = vmatprep.subr.mxu0 0.0
        %537 = vmatpush1.msra.mxu0 %v517
        %538 = vmatprep.subr.mxu0 0.0
        %539 = vmatpush1.msra.mxu0 %v518
        %540 = vmatprep.subr.mxu0 0.0
        %541 = vmatpush1.msra.mxu0 %v519
        %542 = vmatprep.subr.mxu0 0.0
        %543 = vmatpush1.msra.mxu0 0.0
        %544 = vmatprep.subr.mxu0 0.0
        %545 = vmatpush1.msra.mxu0 0.0
        %546 = vmatprep.subr.mxu0 0.0
        %547 = vmatpush1.msra.mxu0 0.0
        %548 = vmatprep.subr.mxu0 0.0
        %549 = vmatpush1.msra.mxu0 0.0
        %550 = vmatprep.subr.mxu0 0.0
        %551 = vmatpush1.msra.mxu0 0.0
        %552 = vmatprep.subr.mxu0 0.0
        %553 = vmatpush1.msra.mxu0 0.0
        %554 = vmatprep.subr.mxu0 0.0
        %555 = vmatpush1.msra.mxu0 0.0
        %556 = vmatprep.subr.mxu0 0.0
        %557 = vmatpush1.msra.mxu0 0.0
        %558 = vmatprep.subr.mxu0 0.0
        %559 = vmatpush1.msra.mxu0 0.0
        %560 = vmatprep.subr.mxu0 0.0
        %561 = vmatpush1.msra.mxu0 0.0
        %562 = vmatprep.subr.mxu0 0.0
        %563 = vmatpush1.msra.mxu0 0.0
        %564 = vmatprep.subr.mxu0 0.0
        %565 = vmatpush1.msra.mxu0 0.0
        %566 = vmatprep.subr.mxu0 0.0
        %567 = vmatpush1.msra.mxu0 0.0
        %568 = vmatprep.subr.mxu0 0.0
        %569 = vmatpush1.msra.mxu0 0.0
        %570 = vmatprep.subr.mxu0 0.0
        %571 = vmatpush1.msra.mxu0 0.0
        %572 = vmatprep.subr.mxu0 0.0
        %573 = vmatpush1.msra.mxu0 0.0
        %574 = vmatprep.subr.mxu0 0.0
        %575 = vmatpush1.msra.mxu0 0.0
        %576 = vmatprep.subr.mxu0 0.0
        %577 = vmatpush1.msra.mxu0 0.0
        %578 = vmatprep.subr.mxu0 0.0
        %579 = vmatpush1.msra.mxu0 0.0
        %580 = vmatprep.subr.mxu0 0.0
        %581 = vmatpush1.msra.mxu0 0.0
        %582 = vmatprep.subr.mxu0 0.0
        %583 = vmatpush1.msra.mxu0 0.0
        %584 = vmatprep.subr.mxu0 0.0
        %585 = vmatpush1.msra.mxu0 0.0
        %586 = vmatprep.subr.mxu0 0.0
        %587 = vmatpush1.msra.mxu0 0.0
        %588 = vmatprep.subr.mxu0 0.0
        %589 = vmatpush1.msra.mxu0 0.0
        %590 = vmatprep.mubr.f32.mxu0 0.0
        %591 = vmatmul.mubr.f32.gmra.mrb[0].mxu0 %v521
        %v592 = vpop.f32.mrb[0].mxu0
        %v593 = vadd.f32 0.0, %v592
        %v594 = vpop.f32.mrb[0].mxu0
        %595 = vmatprep.mubr.f32.mxu0 0.0
        %596 = vmatmul.mubr.f32.gmra.mrb[0].mxu0 %v524
        %v597 = vpop.f32.mrb[0].mxu0
        %v598 = vadd.f32 0.0, %v597
        %v599 = vpop.f32.mrb[0].mxu0
        %600 = vdwg.mxu0
        %v601 = vadd.f32 %v501, %v593
        %v602 = vadd.f32 %v506, %v598
        %v603 = vld [vmem:[%s2] sm:$0x1]
        %v605 = vlaneseq
        %v606 = vshrl.u32 %v605, 7
        %v607 = vsub.s32 0, %v606
        %v608 = vrot.slane %v603, %v607
        %v610 = vadd.f32 %v601, %v608
        %v611 = vadd.f32 %v602, %v608
        %v612 = vmax.f32 %v610, 0.0
        %v613 = vmax.f32 %v611, 0.0
        %614 = vst [vmem:[#allocation3] sm:$0x1] 0.0
        %615 = vst [vmem:[#allocation3 + $0x11] sm:$0x1] 0.0
        %616 = vst [vmem:[#allocation3 + $0x1] sm:$0xff] %v612
        %617 = vst [vmem:[#allocation3 + $0x9] sm:$0xff] %v613
        %v618 = vld [vmem:[#allocation3] sm:$0xff]
        %v619 = vld [vmem:[#allocation3 + $0x8] sm:$0xff]
        %v620 = vld [vmem:[#allocation7] sm:$0xff]
        %v621 = vld [vmem:[#allocation7 + $0x8] sm:$0xff]
        %v622 = vld [vmem:[#allocation7 + $0x10] sm:$0xff]
        %v623 = vld [vmem:[#allocation7 + $0x18] sm:$0xff]
        %v624 = vld [vmem:[#allocation7 + $0x20] sm:$0xff]
        %v625 = vld [vmem:[#allocation7 + $0x28] sm:$0xff]
        %v626 = vld [vmem:[#allocation7 + $0x30] sm:$0xff]
        %v627 = vld [vmem:[#allocation7 + $0x38] sm:$0xff]
        %v628 = vld [vmem:[#allocation7 + $0x40] sm:$0xff]
        %v629 = vld [vmem:[#allocation7 + $0x48] sm:$0xff]
        %v630 = vld [vmem:[#allocation7 + $0x50] sm:$0xff]
        %v631 = vld [vmem:[#allocation7 + $0x58] sm:$0xff]
        %v632 = vld [vmem:[#allocation7 + $0x60] sm:$0xff]
        %v633 = vld [vmem:[#allocation7 + $0x68] sm:$0xff]
        %v634 = vld [vmem:[#allocation7 + $0x70] sm:$0xff]
        %v635 = vld [vmem:[#allocation7 + $0x78] sm:$0xff]
        %v636 = vld [vmem:[#allocation3 + $0x1] sm:$0xff]
        %v637 = vld [vmem:[#allocation3 + $0x9] sm:$0xff]
        %s638 = scalar_lea.vmem [#allocation7], 128
        %v639 = vld [vmem:[%s638] sm:$0xff]
        %v640 = vld [vmem:[%s638 + $0x8] sm:$0xff]
        %v641 = vld [vmem:[%s638 + $0x10] sm:$0xff]
        %v642 = vld [vmem:[%s638 + $0x18] sm:$0xff]
        %v643 = vld [vmem:[%s638 + $0x20] sm:$0xff]
        %v644 = vld [vmem:[%s638 + $0x28] sm:$0xff]
        %v645 = vld [vmem:[%s638 + $0x30] sm:$0xff]
        %v646 = vld [vmem:[%s638 + $0x38] sm:$0xff]
        %v647 = vld [vmem:[%s638 + $0x40] sm:$0xff]
        %v648 = vld [vmem:[%s638 + $0x48] sm:$0xff]
        %v649 = vld [vmem:[%s638 + $0x50] sm:$0xff]
        %v650 = vld [vmem:[%s638 + $0x58] sm:$0xff]
        %v651 = vld [vmem:[%s638 + $0x60] sm:$0xff]
        %v652 = vld [vmem:[%s638 + $0x68] sm:$0xff]
        %v653 = vld [vmem:[%s638 + $0x70] sm:$0xff]
        %v654 = vld [vmem:[%s638 + $0x78] sm:$0xff]
        %655 = vmatprep.subr.mxu0 0.0
        %656 = vmatpush1.msra.mxu0 %v639
        %657 = vmatprep.subr.mxu0 0.0
        %658 = vmatpush1.msra.mxu0 %v640
        %659 = vmatprep.subr.mxu0 0.0
        %660 = vmatpush1.msra.mxu0 %v641
        %661 = vmatprep.subr.mxu0 0.0
        %662 = vmatpush1.msra.mxu0 %v642
        %663 = vmatprep.subr.mxu0 0.0
        %664 = vmatpush1.msra.mxu0 %v643
        %665 = vmatprep.subr.mxu0 0.0
        %666 = vmatpush1.msra.mxu0 %v644
        %667 = vmatprep.subr.mxu0 0.0
        %668 = vmatpush1.msra.mxu0 %v645
        %669 = vmatprep.subr.mxu0 0.0
        %670 = vmatpush1.msra.mxu0 %v646
        %671 = vmatprep.subr.mxu0 0.0
        %672 = vmatpush1.msra.mxu0 %v647
        %673 = vmatprep.subr.mxu0 0.0
        %674 = vmatpush1.msra.mxu0 %v648
        %675 = vmatprep.subr.mxu0 0.0
        %676 = vmatpush1.msra.mxu0 %v649
        %677 = vmatprep.subr.mxu0 0.0
        %678 = vmatpush1.msra.mxu0 %v650
        %679 = vmatprep.subr.mxu0 0.0
        %680 = vmatpush1.msra.mxu0 %v651
        %681 = vmatprep.subr.mxu0 0.0
        %682 = vmatpush1.msra.mxu0 %v652
        %683 = vmatprep.subr.mxu0 0.0
        %684 = vmatpush1.msra.mxu0 %v653
        %685 = vmatprep.subr.mxu0 0.0
        %686 = vmatpush1.msra.mxu0 %v654
        %687 = vmatprep.subr.mxu0 0.0
        %688 = vmatpush1.msra.mxu0 0.0
        %689 = vmatprep.subr.mxu0 0.0
        %690 = vmatpush1.msra.mxu0 0.0
        %691 = vmatprep.subr.mxu0 0.0
        %692 = vmatpush1.msra.mxu0 0.0
        %693 = vmatprep.subr.mxu0 0.0
        %694 = vmatpush1.msra.mxu0 0.0
        %695 = vmatprep.subr.mxu0 0.0
        %696 = vmatpush1.msra.mxu0 0.0
        %697 = vmatprep.subr.mxu0 0.0
        %698 = vmatpush1.msra.mxu0 0.0
        %699 = vmatprep.subr.mxu0 0.0
        %700 = vmatpush1.msra.mxu0 0.0
        %701 = vmatprep.subr.mxu0 0.0
        %702 = vmatpush1.msra.mxu0 0.0
        %703 = vmatprep.subr.mxu0 0.0
        %704 = vmatpush1.msra.mxu0 0.0
        %705 = vmatprep.subr.mxu0 0.0
        %706 = vmatpush1.msra.mxu0 0.0
        %707 = vmatprep.subr.mxu0 0.0
        %708 = vmatpush1.msra.mxu0 0.0
        %709 = vmatprep.subr.mxu0 0.0
        %710 = vmatpush1.msra.mxu0 0.0
        %711 = vmatprep.subr.mxu0 0.0
        %712 = vmatpush1.msra.mxu0 0.0
        %713 = vmatprep.subr.mxu0 0.0
        %714 = vmatpush1.msra.mxu0 0.0
        %715 = vmatprep.subr.mxu0 0.0
        %716 = vmatpush1.msra.mxu0 0.0
        %717 = vmatprep.subr.mxu0 0.0
        %718 = vmatpush1.msra.mxu0 0.0
        %719 = vmatprep.mubr.f32.mxu0 0.0
        %720 = vmatmul.mubr.f32.gmra.mrb[0].mxu0 %v636
        %v721 = vpop.f32.mrb[0].mxu0
        %v722 = vadd.f32 0.0, %v721
        %v723 = vpop.f32.mrb[0].mxu0
        %724 = vmatprep.mubr.f32.mxu0 0.0
        %725 = vmatmul.mubr.f32.gmra.mrb[0].mxu0 %v637
        %v726 = vpop.f32.mrb[0].mxu0
        %v727 = vadd.f32 0.0, %v726
        %v728 = vpop.f32.mrb[0].mxu0
        %729 = vdwg.mxu0
        %730 = vmatprep.subr.mxu0 0.0
        %731 = vmatpush1.msra.mxu0 %v620
        %732 = vmatprep.subr.mxu0 0.0
        %733 = vmatpush1.msra.mxu0 %v621
        %734 = vmatprep.subr.mxu0 0.0
        %735 = vmatpush1.msra.mxu0 %v622
        %736 = vmatprep.subr.mxu0 0.0
        %737 = vmatpush1.msra.mxu0 %v623
        %738 = vmatprep.subr.mxu0 0.0
        %739 = vmatpush1.msra.mxu0 %v624
        %740 = vmatprep.subr.mxu0 0.0
        %741 = vmatpush1.msra.mxu0 %v625
        %742 = vmatprep.subr.mxu0 0.0
        %743 = vmatpush1.msra.mxu0 %v626
        %744 = vmatprep.subr.mxu0 0.0
        %745 = vmatpush1.msra.mxu0 %v627
        %746 = vmatprep.subr.mxu0 0.0
        %747 = vmatpush1.msra.mxu0 %v628
        %748 = vmatprep.subr.mxu0 0.0
        %749 = vmatpush1.msra.mxu0 %v629
        %750 = vmatprep.subr.mxu0 0.0
        %751 = vmatpush1.msra.mxu0 %v630
        %752 = vmatprep.subr.mxu0 0.0
        %753 = vmatpush1.msra.mxu0 %v631
        %754 = vmatprep.subr.mxu0 0.0
        %755 = vmatpush1.msra.mxu0 %v632
        %756 = vmatprep.subr.mxu0 0.0
        %757 = vmatpush1.msra.mxu0 %v633
        %758 = vmatprep.subr.mxu0 0.0
        %759 = vmatpush1.msra.mxu0 %v634
        %760 = vmatprep.subr.mxu0 0.0
        %761 = vmatpush1.msra.mxu0 %v635
        %762 = vmatprep.subr.mxu0 0.0
        %763 = vmatpush1.msra.mxu0 0.0
        %764 = vmatprep.subr.mxu0 0.0
        %765 = vmatpush1.msra.mxu0 0.0
        %766 = vmatprep.subr.mxu0 0.0
        %767 = vmatpush1.msra.mxu0 0.0
        %768 = vmatprep.subr.mxu0 0.0
        %769 = vmatpush1.msra.mxu0 0.0
        %770 = vmatprep.subr.mxu0 0.0
        %771 = vmatpush1.msra.mxu0 0.0
        %772 = vmatprep.subr.mxu0 0.0
        %773 = vmatpush1.msra.mxu0 0.0
        %774 = vmatprep.subr.mxu0 0.0
        %775 = vmatpush1.msra.mxu0 0.0
        %776 = vmatprep.subr.mxu0 0.0
        %777 = vmatpush1.msra.mxu0 0.0
        %778 = vmatprep.subr.mxu0 0.0
        %779 = vmatpush1.msra.mxu0 0.0
        %780 = vmatprep.subr.mxu0 0.0
        %781 = vmatpush1.msra.mxu0 0.0
        %782 = vmatprep.subr.mxu0 0.0
        %783 = vmatpush1.msra.mxu0 0.0
        %784 = vmatprep.subr.mxu0 0.0
        %785 = vmatpush1.msra.mxu0 0.0
        %786 = vmatprep.subr.mxu0 0.0
        %787 = vmatpush1.msra.mxu0 0.0
        %788 = vmatprep.subr.mxu0 0.0
        %789 = vmatpush1.msra.mxu0 0.0
        %790 = vmatprep.subr.mxu0 0.0
        %791 = vmatpush1.msra.mxu0 0.0
        %792 = vmatprep.subr.mxu0 0.0
        %793 = vmatpush1.msra.mxu0 0.0
        %794 = vmatprep.mubr.f32.mxu0 0.0
        %795 = vmatmul.mubr.f32.gmra.mrb[0].mxu0 %v618
        %v796 = vpop.f32.mrb[0].mxu0
        %v797 = vadd.f32 %v722, %v796
        %v798 = vpop.f32.mrb[0].mxu0
        %799 = vmatprep.mubr.f32.mxu0 0.0
        %800 = vmatmul.mubr.f32.gmra.mrb[0].mxu0 %v619
        %v801 = vpop.f32.mrb[0].mxu0
        %v802 = vadd.f32 %v727, %v801
        %v803 = vpop.f32.mrb[0].mxu0
        %804 = vdwg.mxu0
        %v805 = vld [vmem:[#allocation3 + $0x2] sm:$0xff]
        %v806 = vld [vmem:[#allocation3 + $0xa] sm:$0xff]
        %s807 = scalar_lea.vmem [#allocation7], 256
        %v808 = vld [vmem:[%s807] sm:$0xff]
        %v809 = vld [vmem:[%s807 + $0x8] sm:$0xff]
        %v810 = vld [vmem:[%s807 + $0x10] sm:$0xff]
        %v811 = vld [vmem:[%s807 + $0x18] sm:$0xff]
        %v812 = vld [vmem:[%s807 + $0x20] sm:$0xff]
        %v813 = vld [vmem:[%s807 + $0x28] sm:$0xff]
        %v814 = vld [vmem:[%s807 + $0x30] sm:$0xff]
        %v815 = vld [vmem:[%s807 + $0x38] sm:$0xff]
        %v816 = vld [vmem:[%s807 + $0x40] sm:$0xff]
        %v817 = vld [vmem:[%s807 + $0x48] sm:$0xff]
        %v818 = vld [vmem:[%s807 + $0x50] sm:$0xff]
        %v819 = vld [vmem:[%s807 + $0x58] sm:$0xff]
        %v820 = vld [vmem:[%s807 + $0x60] sm:$0xff]
        %v821 = vld [vmem:[%s807 + $0x68] sm:$0xff]
        %v822 = vld [vmem:[%s807 + $0x70] sm:$0xff]
        %v823 = vld [vmem:[%s807 + $0x78] sm:$0xff]
        %824 = vmatprep.subr.mxu0 0.0
        %825 = vmatpush1.msra.mxu0 %v808
        %826 = vmatprep.subr.mxu0 0.0
        %827 = vmatpush1.msra.mxu0 %v809
        %828 = vmatprep.subr.mxu0 0.0
        %829 = vmatpush1.msra.mxu0 %v810
        %830 = vmatprep.subr.mxu0 0.0
        %831 = vmatpush1.msra.mxu0 %v811
        %832 = vmatprep.subr.mxu0 0.0
        %833 = vmatpush1.msra.mxu0 %v812
        %834 = vmatprep.subr.mxu0 0.0
        %835 = vmatpush1.msra.mxu0 %v813
        %836 = vmatprep.subr.mxu0 0.0
        %837 = vmatpush1.msra.mxu0 %v814
        %838 = vmatprep.subr.mxu0 0.0
        %839 = vmatpush1.msra.mxu0 %v815
        %840 = vmatprep.subr.mxu0 0.0
        %841 = vmatpush1.msra.mxu0 %v816
        %842 = vmatprep.subr.mxu0 0.0
        %843 = vmatpush1.msra.mxu0 %v817
        %844 = vmatprep.subr.mxu0 0.0
        %845 = vmatpush1.msra.mxu0 %v818
        %846 = vmatprep.subr.mxu0 0.0
        %847 = vmatpush1.msra.mxu0 %v819
        %848 = vmatprep.subr.mxu0 0.0
        %849 = vmatpush1.msra.mxu0 %v820
        %850 = vmatprep.subr.mxu0 0.0
        %851 = vmatpush1.msra.mxu0 %v821
        %852 = vmatprep.subr.mxu0 0.0
        %853 = vmatpush1.msra.mxu0 %v822
        %854 = vmatprep.subr.mxu0 0.0
        %855 = vmatpush1.msra.mxu0 %v823
        %856 = vmatprep.subr.mxu0 0.0
        %857 = vmatpush1.msra.mxu0 0.0
        %858 = vmatprep.subr.mxu0 0.0
        %859 = vmatpush1.msra.mxu0 0.0
        %860 = vmatprep.subr.mxu0 0.0
        %861 = vmatpush1.msra.mxu0 0.0
        %862 = vmatprep.subr.mxu0 0.0
        %863 = vmatpush1.msra.mxu0 0.0
        %864 = vmatprep.subr.mxu0 0.0
        %865 = vmatpush1.msra.mxu0 0.0
        %866 = vmatprep.subr.mxu0 0.0
        %867 = vmatpush1.msra.mxu0 0.0
        %868 = vmatprep.subr.mxu0 0.0
        %869 = vmatpush1.msra.mxu0 0.0
        %870 = vmatprep.subr.mxu0 0.0
        %871 = vmatpush1.msra.mxu0 0.0
        %872 = vmatprep.subr.mxu0 0.0
        %873 = vmatpush1.msra.mxu0 0.0
        %874 = vmatprep.subr.mxu0 0.0
        %875 = vmatpush1.msra.mxu0 0.0
        %876 = vmatprep.subr.mxu0 0.0
        %877 = vmatpush1.msra.mxu0 0.0
        %878 = vmatprep.subr.mxu0 0.0
        %879 = vmatpush1.msra.mxu0 0.0
        %880 = vmatprep.subr.mxu0 0.0
        %881 = vmatpush1.msra.mxu0 0.0
        %882 = vmatprep.subr.mxu0 0.0
        %883 = vmatpush1.msra.mxu0 0.0
        %884 = vmatprep.subr.mxu0 0.0
        %885 = vmatpush1.msra.mxu0 0.0
        %886 = vmatprep.subr.mxu0 0.0
        %887 = vmatpush1.msra.mxu0 0.0
        %888 = vmatprep.mubr.f32.mxu0 0.0
        %889 = vmatmul.mubr.f32.gmra.mrb[0].mxu0 %v805
        %v890 = vpop.f32.mrb[0].mxu0
        %v891 = vadd.f32 0.0, %v890
        %v892 = vpop.f32.mrb[0].mxu0
        %893 = vmatprep.mubr.f32.mxu0 0.0
        %894 = vmatmul.mubr.f32.gmra.mrb[0].mxu0 %v806
        %v895 = vpop.f32.mrb[0].mxu0
        %v896 = vadd.f32 0.0, %v895
        %v897 = vpop.f32.mrb[0].mxu0
        %898 = vdwg.mxu0
        %v899 = vadd.f32 %v797, %v891
        %v900 = vadd.f32 %v802, %v896
        %v901 = vld [vmem:[%s4] sm:$0x1]
        %v903 = vlaneseq
        %v904 = vshrl.u32 %v903, 7
        %v905 = vsub.s32 0, %v904
        %v906 = vrot.slane %v901, %v905
        %v908 = vadd.f32 %v899, %v906
        %v909 = vadd.f32 %v900, %v906
        %910 = vst [vmem:[%s305] sm:$0xff] %v908
        %911 = vst [vmem:[%s305 + $0x8] sm:$0xff] %v909
        %v912 = vld [vmem:[%s5] sm:$0xff]
        %v913 = vld [vmem:[%s5 + $0x8] sm:$0xff]
        %v914 = vld [vmem:[%s5 + $0x10] sm:$0xff]
        %v915 = vld [vmem:[%s5 + $0x18] sm:$0xff]
        %v916 = vld [vmem:[%s5 + $0x20] sm:$0xff]
        %v917 = vld [vmem:[%s5 + $0x28] sm:$0xff]
        %v918 = vld [vmem:[%s5 + $0x30] sm:$0xff]
        %v919 = vld [vmem:[%s5 + $0x38] sm:$0xff]
        %v920 = vld [vmem:[%s5 + $0x40] sm:$0xff]
        %v921 = vld [vmem:[%s5 + $0x48] sm:$0xff]
        %v922 = vld [vmem:[%s5 + $0x50] sm:$0xff]
        %v923 = vld [vmem:[%s5 + $0x58] sm:$0xff]
        %v924 = vld [vmem:[%s5 + $0x60] sm:$0xff]
        %v925 = vld [vmem:[%s5 + $0x68] sm:$0xff]
        %v926 = vld [vmem:[%s5 + $0x70] sm:$0xff]
        %v927 = vld [vmem:[%s5 + $0x78] sm:$0xff]
        %928 = vmatprep.subr.mxu0 0.0
        %929 = vmatpush1.msra.mxu0 %v912
        %930 = vmatprep.subr.mxu0 0.0
        %931 = vmatpush1.msra.mxu0 %v913
        %932 = vmatprep.subr.mxu0 0.0
        %933 = vmatpush1.msra.mxu0 %v914
        %934 = vmatprep.subr.mxu0 0.0
        %935 = vmatpush1.msra.mxu0 %v915
        %936 = vmatprep.subr.mxu0 0.0
        %937 = vmatpush1.msra.mxu0 %v916
        %938 = vmatprep.subr.mxu0 0.0
        %939 = vmatpush1.msra.mxu0 %v917
        %940 = vmatprep.subr.mxu0 0.0
        %941 = vmatpush1.msra.mxu0 %v918
        %942 = vmatprep.subr.mxu0 0.0
        %943 = vmatpush1.msra.mxu0 %v919
        %944 = vmatprep.subr.mxu0 0.0
        %945 = vmatpush1.msra.mxu0 %v920
        %946 = vmatprep.subr.mxu0 0.0
        %947 = vmatpush1.msra.mxu0 %v921
        %948 = vmatprep.subr.mxu0 0.0
        %949 = vmatpush1.msra.mxu0 %v922
        %950 = vmatprep.subr.mxu0 0.0
        %951 = vmatpush1.msra.mxu0 %v923
        %952 = vmatprep.subr.mxu0 0.0
        %953 = vmatpush1.msra.mxu0 %v924
        %954 = vmatprep.subr.mxu0 0.0
        %955 = vmatpush1.msra.mxu0 %v925
        %956 = vmatprep.subr.mxu0 0.0
        %957 = vmatpush1.msra.mxu0 %v926
        %958 = vmatprep.subr.mxu0 0.0
        %959 = vmatpush1.msra.mxu0 %v927
        %960 = vmatprep.subr.mxu0 0.0
        %961 = vmatpush1.msra.mxu0 0.0
        %962 = vmatprep.subr.mxu0 0.0
        %963 = vmatpush1.msra.mxu0 0.0
        %964 = vmatprep.subr.mxu0 0.0
        %965 = vmatpush1.msra.mxu0 0.0
        %966 = vmatprep.subr.mxu0 0.0
        %967 = vmatpush1.msra.mxu0 0.0
        %968 = vmatprep.subr.mxu0 0.0
        %969 = vmatpush1.msra.mxu0 0.0
        %970 = vmatprep.subr.mxu0 0.0
        %971 = vmatpush1.msra.mxu0 0.0
        %972 = vmatprep.subr.mxu0 0.0
        %973 = vmatpush1.msra.mxu0 0.0
        %974 = vmatprep.subr.mxu0 0.0
        %975 = vmatpush1.msra.mxu0 0.0
        %976 = vmatprep.subr.mxu0 0.0
        %977 = vmatpush1.msra.mxu0 0.0
        %978 = vmatprep.subr.mxu0 0.0
        %979 = vmatpush1.msra.mxu0 0.0
        %980 = vmatprep.subr.mxu0 0.0
        %981 = vmatpush1.msra.mxu0 0.0
        %982 = vmatprep.subr.mxu0 0.0
        %983 = vmatpush1.msra.mxu0 0.0
        %984 = vmatprep.subr.mxu0 0.0
        %985 = vmatpush1.msra.mxu0 0.0
        %986 = vmatprep.subr.mxu0 0.0
        %987 = vmatpush1.msra.mxu0 0.0
        %988 = vmatprep.subr.mxu0 0.0
        %989 = vmatpush1.msra.mxu0 0.0
        %990 = vmatprep.subr.mxu0 0.0
        %991 = vmatpush1.msra.mxu0 0.0
        %992 = vmatprep.mubr.f32.mxu0 0.0
        %993 = vmatmul.mubr.f32.gmra.mrb[0].mxu0 %v908
        %v994 = vpop.f32.mrb[0].mxu0
        %v995 = vadd.f32 0.0, %v994
        %v996 = vpop.f32.mrb[0].mxu0
        %997 = vmatprep.mubr.f32.mxu0 0.0
        %998 = vmatmul.mubr.f32.gmra.mrb[0].mxu0 %v909
        %v999 = vpop.f32.mrb[0].mxu0
        %v1000 = vadd.f32 0.0, %v999
        %v1001 = vpop.f32.mrb[0].mxu0
        %1002 = vdwg.mxu0
        %vm1003 = vcmask 64512
        %v1004 = vsel %vm1003, %v995, 0.0
        %v1005 = vsel %vm1003, %v1000, 0.0
        %v1006 = vadd.f32 %v1004, %v1005
        %v1007 = vrot.slane %v1006, 4
        %v1008 = vadd.f32 %v1006, %v1007
        %v1009 = vrot.slane %v1008, 2
        %v1010 = vadd.f32 %v1008, %v1009
        %v1011 = vrot.slane %v1010, 1
        %v1012 = vadd.f32 %v1010, %v1011
        %v1013 = vmul.f32 %v908, %v908
        %v1014 = vmul.f32 %v909, %v909
        %1015 = vmatprep.subr.mxu0 0.0
        %1016 = vmatpush1.msra.mxu0 %v912
        %1017 = vmatprep.subr.mxu0 0.0
        %1018 = vmatpush1.msra.mxu0 %v913
        %1019 = vmatprep.subr.mxu0 0.0
        %1020 = vmatpush1.msra.mxu0 %v914
        %1021 = vmatprep.subr.mxu0 0.0
        %1022 = vmatpush1.msra.mxu0 %v915
        %1023 = vmatprep.subr.mxu0 0.0
        %1024 = vmatpush1.msra.mxu0 %v916
        %1025 = vmatprep.subr.mxu0 0.0
        %1026 = vmatpush1.msra.mxu0 %v917
        %1027 = vmatprep.subr.mxu0 0.0
        %1028 = vmatpush1.msra.mxu0 %v918
        %1029 = vmatprep.subr.mxu0 0.0
        %1030 = vmatpush1.msra.mxu0 %v919
        %1031 = vmatprep.subr.mxu0 0.0
        %1032 = vmatpush1.msra.mxu0 %v920
        %1033 = vmatprep.subr.mxu0 0.0
        %1034 = vmatpush1.msra.mxu0 %v921
        %1035 = vmatprep.subr.mxu0 0.0
        %1036 = vmatpush1.msra.mxu0 %v922
        %1037 = vmatprep.subr.mxu0 0.0
        %1038 = vmatpush1.msra.mxu0 %v923
        %1039 = vmatprep.subr.mxu0 0.0
        %1040 = vmatpush1.msra.mxu0 %v924
        %1041 = vmatprep.subr.mxu0 0.0
        %1042 = vmatpush1.msra.mxu0 %v925
        %1043 = vmatprep.subr.mxu0 0.0
        %1044 = vmatpush1.msra.mxu0 %v926
        %1045 = vmatprep.subr.mxu0 0.0
        %1046 = vmatpush1.msra.mxu0 %v927
        %1047 = vmatprep.subr.mxu0 0.0
        %1048 = vmatpush1.msra.mxu0 0.0
        %1049 = vmatprep.subr.mxu0 0.0
        %1050 = vmatpush1.msra.mxu0 0.0
        %1051 = vmatprep.subr.mxu0 0.0
        %1052 = vmatpush1.msra.mxu0 0.0
        %1053 = vmatprep.subr.mxu0 0.0
        %1054 = vmatpush1.msra.mxu0 0.0
        %1055 = vmatprep.subr.mxu0 0.0
        %1056 = vmatpush1.msra.mxu0 0.0
        %1057 = vmatprep.subr.mxu0 0.0
        %1058 = vmatpush1.msra.mxu0 0.0
        %1059 = vmatprep.subr.mxu0 0.0
        %1060 = vmatpush1.msra.mxu0 0.0
        %1061 = vmatprep.subr.mxu0 0.0
        %1062 = vmatpush1.msra.mxu0 0.0
        %1063 = vmatprep.subr.mxu0 0.0
        %1064 = vmatpush1.msra.mxu0 0.0
        %1065 = vmatprep.subr.mxu0 0.0
        %1066 = vmatpush1.msra.mxu0 0.0
        %1067 = vmatprep.subr.mxu0 0.0
        %1068 = vmatpush1.msra.mxu0 0.0
        %1069 = vmatprep.subr.mxu0 0.0
        %1070 = vmatpush1.msra.mxu0 0.0
        %1071 = vmatprep.subr.mxu0 0.0
        %1072 = vmatpush1.msra.mxu0 0.0
        %1073 = vmatprep.subr.mxu0 0.0
        %1074 = vmatpush1.msra.mxu0 0.0
        %1075 = vmatprep.subr.mxu0 0.0
        %1076 = vmatpush1.msra.mxu0 0.0
        %1077 = vmatprep.subr.mxu0 0.0
        %1078 = vmatpush1.msra.mxu0 0.0
        %1079 = vmatprep.mubr.f32.mxu0 0.0
        %1080 = vmatmul.mubr.f32.gmra.mrb[0].mxu0 %v1013
        %v1081 = vpop.f32.mrb[0].mxu0
        %v1082 = vadd.f32 0.0, %v1081
        %v1083 = vpop.f32.mrb[0].mxu0
        %1084 = vmatprep.mubr.f32.mxu0 0.0
        %1085 = vmatmul.mubr.f32.gmra.mrb[0].mxu0 %v1014
        %v1086 = vpop.f32.mrb[0].mxu0
        %v1087 = vadd.f32 0.0, %v1086
        %v1088 = vpop.f32.mrb[0].mxu0
        %1089 = vdwg.mxu0
        %v1090 = vsel %vm1003, %v1082, 0.0
        %v1091 = vsel %vm1003, %v1087, 0.0
        %v1092 = vadd.f32 %v1090, %v1091
        %v1093 = vrot.slane %v1092, 4
        %v1094 = vadd.f32 %v1092, %v1093
        %v1095 = vrot.slane %v1094, 2
        %v1096 = vadd.f32 %v1094, %v1095
        %v1097 = vrot.slane %v1096, 1
        %v1098 = vadd.f32 %v1096, %v1097
        %vm1099 = vcmask 57344
        %1100 = vst.msk [vmem:[%s312] sm:$0x1] %vm1099, %v1012
        %1101 = vst.msk [vmem:[%s312 + $0x1] sm:$0x1] %vm1099, %v1098
        %s1102 = sand.u32 %s166, 1
        %s1103 = scalar_lea.sflag [#allocation6], %s1102
        %s1104 = sand.u32 %s166, 1
        %s1105 = smul.addr %s1104, 16
        %s1106 = scalar_lea.vmem [#allocation9], %s1105
        %s1107 = sand.u32 %s192, 1
        %s1108 = scalar_lea.sflag [#allocation11], %s1107
        %s1109 = sand.u32 %s192, 1
        %s1110 = smul.addr %s1109, 2
        %s1111 = scalar_lea.vmem [#allocation10], %s1110
        // Predicated region
        $region53: #{tpu_custom_call.1} parent=43 // pred_check
          %p1112 = pneg %p176
        $region54: #{tpu_custom_call.1} parent=43 // pred_check_branch
          %1114 = sbr.rel (%p1112) target = $region56
        $region55: #{tpu_custom_call.1} parent=43 // pred_region
          %s1116 = ssub.s32 256, 256
          %1117 = vsyncadd %s1103, %s1116
          %s1118 = smul.addr %s27, 2
          %s1119 = smul.addr %s1118, 128
          %s1120 = scalar_lea.hbm %s6, %s1119
          %s1121 = sshll.u32 %s1106, 4
          %s1122 = int_to_ptr.vmem [resolvable:$true] %s1121
          %1127 = dma.vmem_to_hbm [thread:$0]  %s1122, 256, %s1120, %s1103, 128, 128, 8
        $region56: #{tpu_custom_call.1} parent=43 // pred_fallthru
          _
        // Predicated region
        $region57: #{tpu_custom_call.1} parent=43 // pred_check
          %p1128 = pneg %p202
        $region58: #{tpu_custom_call.1} parent=43 // pred_check_branch
          %1130 = sbr.rel (%p1128) target = $region60
        $region59: #{tpu_custom_call.1} parent=43 // pred_region
          %s1132 = ssub.s32 32, 32
          %1133 = vsyncadd %s1108, %s1132
          %s1134 = smul.addr %s27, 32
          %s1135 = scalar_lea.hbm %s7, %s1134
          %s1137 = sshll.u32 %s1111, 4
          %s1138 = int_to_ptr.vmem [resolvable:$true] %s1137
          %1140 = dma.vmem_to_hbm [thread:$0]  %s1138, 32, %s1135, %s1108
        $region60: #{tpu_custom_call.1} parent=43 // pred_fallthru
          _
      $region44: #{tpu_custom_call.1} parent=5 // pred_fallthru
        _
      %p1141 = scmp.le.s32.totalorder 2, %s22
      // Predicated region
      $region61: #{tpu_custom_call.1} parent=5 // pred_check
        %p1142 = pneg %p1141
      $region62: #{tpu_custom_call.1} parent=5 // pred_check_branch
        %1144 = sbr.rel (%p1142) target = $region64
      $region63: #{tpu_custom_call.1} parent=5 // pred_region
        %s1145 = ssub.s32 %s22, 2
        // Predicated region
        $region65: #{tpu_custom_call.1} parent=63 // pred_check
          %p1146 = pneg %p182
        $region66: #{tpu_custom_call.1} parent=63 // pred_check_branch
          %1148 = sbr.rel (%p1146) target = $region68
        $region67: #{tpu_custom_call.1} parent=63 // pred_region
          %s1149 = sand.u32 %s167, 1
          %s1150 = scalar_lea.sflag [#allocation6], %s1149
          %s1151 = sand.u32 %s167, 1
          %s1152 = smul.addr %s1151, 16
          %s1153 = scalar_lea.vmem [#allocation9], %s1152
          %1154 = dma.done %s1150, 256
        $region68: #{tpu_custom_call.1} parent=63 // pred_fallthru
          _
        // Predicated region
        $region69: #{tpu_custom_call.1} parent=63 // pred_check
          %p1155 = pneg %p208
        $region70: #{tpu_custom_call.1} parent=63 // pred_check_branch
          %1157 = sbr.rel (%p1155) target = $region72
        $region71: #{tpu_custom_call.1} parent=63 // pred_region
          %s1158 = sand.u32 %s193, 1
          %s1159 = scalar_lea.sflag [#allocation11], %s1158
          %s1160 = sand.u32 %s193, 1
          %s1161 = smul.addr %s1160, 2
          %s1162 = scalar_lea.vmem [#allocation10], %s1161
          %1163 = dma.done %s1159, 32
        $region72: #{tpu_custom_call.1} parent=63 // pred_fallthru
          _
      $region64: #{tpu_custom_call.1} parent=5 // pred_fallthru
        _
    $region6: #{tpu_custom_call.1} parent=1 // loop_footer
      %s26 = sadd.s32 1, %s22
    $region7: #{tpu_custom_call.1} parent=1 // loop_footer_branch
      %21 = sbr.rel target = $region3
    $region8: #{tpu_custom_call.1} parent=1 // loop_exit
      _
    %1164 = vsyncpa [#allocation5], 1
    %s1165 = scalar_lea.sflag [#allocation5], 1
    %1166 = vsyncpa %s1165, 1
    %1167 = vsyncpa [#allocation8], 1
    %1168 = vsyncpa [#allocation6], 1
    %s1169 = scalar_lea.sflag [#allocation6], 1
    %1170 = vsyncpa %s1169, 1
    %1171 = vsyncpa [#allocation11], 1
    %s1172 = scalar_lea.sflag [#allocation11], 1
    %1173 = vsyncpa %s1172, 1

</llo_original>
